<compile_context>
chip_gen: v6e
topology: v6e:2x2x1
jax: 0.10.0
libtpu: 0.0.40
codegen_flags: <defaults>
</compile_context>

<pallas_src>
import jax
import jax.numpy as jnp
import numpy as np
from jax.experimental import pallas as pl
from jax.experimental.pallas import tpu as pltpu

# ----- module hyper-parameters (defaults of Conv1dEncoder) -------------------
HORIZON = 10
INPUT_DIM = 16
LATENT_DIM = 16
COND_DIM = 36
H_CHANNELS = (32, 64, 128)
BETA = 1e-5
K, STRIDE, PAD = 3, 2, 1
GN_EPS = 1e-5

# Matmul operand dtype.  Set to jnp.bfloat16 on v6e/v7x to halve MXU passes and
# the vreg footprint of the patch temporaries (keep GN/Mish math in f32).
# Left at f32 by default so the numerical check below is tight.
MATMUL_DTYPE = jnp.float32


def _conv_out_len(l):
    return (l + 2 * PAD - K) // STRIDE + 1


L_SEQ = [HORIZON]
for _ in H_CHANNELS:
    L_SEQ.append(_conv_out_len(L_SEQ[-1]))          # [10, 5, 3, 2]
CH_SEQ = (INPUT_DIM,) + H_CHANNELS                  # (16, 32, 64, 128)
OUT_DIM = H_CHANNELS[-1] * L_SEQ[-1]                # 128 * 2 = 256


def _round_up(n, m):
    return (n + m - 1) // m * m


# ----------------------------- kernel helpers ---------------------------------
def _mish(x):
    # x * tanh(softplus(x)) = x * e*(e+2) / (e*(e+2) + 2), with e = exp(x).
    # One EUP exp; exact divide (VPU cost negligible, avoids approx-reciprocal
    # error compounding through the three conv layers).
    e = jnp.exp(jnp.minimum(x, 20.0))               # gate == 1.0 beyond 20 in f32
    n = e * (e + 2.0)
    return x * (n / (n + 2.0))


def _pad_l(h):
    # One zero row on each side of the leading (length) axis.
    z = jnp.zeros((1,) + h.shape[1:], h.dtype)
    return jnp.concatenate([z, h, z], axis=0)


def _conv_gn_mish(h_pad, wbuf, c_in, c_out, l_out, bt):
    """Conv1d(k=3,s=2,p=1) + GroupNorm(1) + Mish.

    h_pad: (l_in+2, bt, c_in)   activations, zero row at each end of L.
    wbuf:  (K*c_in + 3, c_out)  rows = [tap0 | tap1 | tap2 | bias; gamma; beta].
    returns (l_out, bt, c_out).
    """
    # --- conv: K per-tap accumulating matmuls (row index = t*bt + b) ---------
    acc = None
    for k in range(K):
        hk = jnp.concatenate([h_pad[t * STRIDE + k] for t in range(l_out)],
                             axis=0)                                   # (l_out*bt, c_in)
        wk = wbuf[k * c_in:(k + 1) * c_in, :]                          # (c_in, c_out)
        d = jnp.dot(hk.astype(MATMUL_DTYPE), wk.astype(MATMUL_DTYPE),
                    preferred_element_type=jnp.float32)
        acc = d if acc is None else acc + d

    base = K * c_in
    bias = wbuf[base:base + 1, :]
    gamma = wbuf[base + 1:base + 2, :]
    beta = wbuf[base + 2:base + 3, :]
    y = acc + bias                                                     # (l_out*bt, c_out)

    # --- GroupNorm(num_groups=1): per-sample stats over (l_out, c_out) -------
    # Channel (lane) reduce on the MXU; the L reduce is a leading-axis VPU add.
    inv_n = 1.0 / float(l_out * c_out)
    ones_c = jnp.ones((c_out, 1), jnp.float32)
    row_sum = jnp.dot(y, ones_c, preferred_element_type=jnp.float32)   # (l_out*bt, 1)
    mean = jnp.sum(row_sum.reshape(l_out, bt, 1), axis=0,
                   keepdims=True) * inv_n                              # (1, bt, 1)
    d3 = y.reshape(l_out, bt, c_out) - mean
    d2 = d3.reshape(l_out * bt, c_out)
    row_ssq = jnp.dot(d2 * d2, ones_c, preferred_element_type=jnp.float32)
    var = jnp.sum(row_ssq.reshape(l_out, bt, 1), axis=0,
                  keepdims=True) * inv_n                               # (1, bt, 1)
    yn = d3 * jax.lax.rsqrt(var + GN_EPS)
    yn = yn * gamma[None] + beta[None]
    return _mish(yn)                                                   # (l_out, bt, c_out)


# ----------------------------- kernel ----------------------------------------
def encoder_kernel(x_ref, cond_ref, eps_ref, w1_ref, w2_ref, w3_ref, fc_ref,
                   out_ref):
    bt = x_ref.shape[1]
    h = _conv_gn_mish(x_ref[...], w1_ref[...], CH_SEQ[0], CH_SEQ[1], L_SEQ[1], bt)
    h = _conv_gn_mish(_pad_l(h), w2_ref[...], CH_SEQ[1], CH_SEQ[2], L_SEQ[2], bt)
    h = _conv_gn_mish(_pad_l(h), w3_ref[...], CH_SEQ[2], CH_SEQ[3], L_SEQ[3], bt)
    # h: (L3, bt, C3) = (2, bt, 128)

    fc = fc_ref[...]
    c3 = CH_SEQ[3]
    b_fc = fc[0:1, :]                                                  # (1, 2*latent)
    wc = fc[8 + L_SEQ[3] * c3:8 + L_SEQ[3] * c3 + COND_DIM, :]         # (COND, 2*latent)
    # Fused [fc_mu | fc_var]: accumulating dots over row slabs (no lane concat).
    out = jnp.dot(cond_ref[...].astype(MATMUL_DTYPE), wc.astype(MATMUL_DTYPE),
                  preferred_element_type=jnp.float32) + b_fc
    for l in range(L_SEQ[3]):
        wl = fc[8 + l * c3:8 + (l + 1) * c3, :]                        # (C3, 2*latent)
        out = out + jnp.dot(h[l].astype(MATMUL_DTYPE), wl.astype(MATMUL_DTYPE),
                            preferred_element_type=jnp.float32)

    mu = out[:, :LATENT_DIM]
    lv = out[:, LATENT_DIM:]
    sigma = jnp.exp(lv)
    z = mu + sigma * eps_ref[...]
    # Per-element KL contributions; the wrapper sums over the unpadded batch.
    kl_terms = BETA * (sigma * sigma + mu * mu - lv - 0.5)
    out_ref[...] = jnp.concatenate([z, kl_terms], axis=-1)             # (bt, 2*latent)


# ----------------------------- wrapper ----------------------------------------
def init_params(key):
    params = {}
    keys = jax.random.split(key, 8)
    conv = []
    for i in range(3):
        c_in, c_out = CH_SEQ[i], CH_SEQ[i + 1]
        kw, kb, kg, kt = jax.random.split(keys[i], 4)
        std = 1.0 / np.sqrt(c_in * K)
        w = jax.random.normal(kw, (c_out, c_in, K), jnp.float32) * std
        b = jax.random.normal(kb, (c_out,), jnp.float32) * std
        g = 1.0 + 0.1 * jax.random.normal(kg, (c_out,), jnp.float32)
        t = 0.1 * jax.random.normal(kt, (c_out,), jnp.float32)
        conv.append((w, b, g, t))
    params['conv'] = conv
    in_f = OUT_DIM + COND_DIM
    k1, k2, k3, k4 = jax.random.split(keys[5], 4)
    params['fc_mu'] = (jax.random.normal(k1, (LATENT_DIM, in_f), jnp.float32) / np.sqrt(in_f),
                       jax.random.normal(k2, (LATENT_DIM,), jnp.float32) / np.sqrt(in_f))
    # keep logvar modest so exp() stays well-conditioned
    params['fc_var'] = (0.1 * jax.random.normal(k3, (LATENT_DIM, in_f), jnp.float32) / np.sqrt(in_f),
                        0.1 * jax.random.normal(k4, (LATENT_DIM,), jnp.float32) / np.sqrt(in_f))
    return params


def _pack_params(params):
    """Pack PyTorch-convention params into 4 kernel buffers."""
    packed = []
    for (w, b, g, t) in params['conv']:
        c_out, c_in, _ = w.shape
        # per-tap weights: w[co, ci, k] -> tap_k[ci, co], stacked on rows,
        # then the three affine rows [bias; gamma; beta].
        taps = jnp.concatenate(
            [jnp.transpose(w[:, :, k], (1, 0)) for k in range(K)], axis=0)   # (K*c_in, c_out)
        aff = jnp.stack([b, g, t], axis=0)                                   # (3, c_out)
        packed.append(jnp.concatenate([taps, aff], axis=0).astype(jnp.float32))

    l3, c3 = L_SEQ[3], CH_SEQ[3]
    Wm, bm = params['fc_mu']
    Wv, bv = params['fc_var']
    W = jnp.concatenate([Wm, Wv], axis=0)                    # (2*latent, OUT_DIM+COND)
    # PyTorch flatten order is (C, L): column = c*L3 + l.  Split into per-l
    # row slabs for the accumulating dots in the kernel.
    Wx = W[:, :OUT_DIM].reshape(2 * LATENT_DIM, c3, l3)
    slabs = [jnp.transpose(Wx[:, :, l], (1, 0)) for l in range(l3)]          # (c3, 2*latent)
    Wc = jnp.transpose(W[:, OUT_DIM:], (1, 0))                               # (COND, 2*latent)
    bias_rows = jnp.zeros((8, 2 * LATENT_DIM), jnp.float32)                  # 8-row aligned slab
    bias_rows = bias_rows.at[0].set(jnp.concatenate([bm, bv]))
    fc_buf = jnp.concatenate([bias_rows] + slabs + [Wc], axis=0)             # (8+2*c3+COND, 2*latent)
    packed.append(fc_buf.astype(jnp.float32))
    return packed


def conv1d_encoder_forward(params, x_ncl, cond, eps, b_tile=None):
    B = x_ncl.shape[0]
    if b_tile is None:
        # Large tiles amortize per-grid-step overhead; cap at 512, and for
        # large B yield >=2 blocks so both v7x TensorCores get work.
        b_tile = max(8, min(512, _round_up((B + 1) // 2, 8)))
    B_pad = _round_up(B, b_tile)
    nblk = B_pad // b_tile

    # NCL -> (L, B, C) with one zero L-row on each side (conv padding=1).
    x_lbc = jnp.transpose(x_ncl, (2, 0, 1)).astype(jnp.float32)
    x_lbc = jnp.pad(x_lbc, ((1, 1), (0, 0), (0, 0)))
    cond_f = cond.astype(jnp.float32)
    eps_f = eps.astype(jnp.float32)
    if B_pad != B:
        pad = B_pad - B
        x_lbc = jnp.pad(x_lbc, ((0, 0), (0, pad), (0, 0)))
        cond_f = jnp.pad(cond_f, ((0, pad), (0, 0)))
        eps_f = jnp.pad(eps_f, ((0, pad), (0, 0)))

    packed = _pack_params(params)

    in_specs = [
        pl.BlockSpec((L_SEQ[0] + 2, b_tile, CH_SEQ[0]), lambda i: (0, i, 0)),  # x (pre-padded L)
        pl.BlockSpec((b_tile, COND_DIM), lambda i: (i, 0)),                    # cond
        pl.BlockSpec((b_tile, LATENT_DIM), lambda i: (i, 0)),                  # eps
    ]
    in_specs += [pl.BlockSpec(p.shape, lambda i: (0, 0)) for p in packed]      # packed params

    out_spec = pl.BlockSpec((b_tile, 2 * LATENT_DIM), lambda i: (i, 0))
    out_shape = jax.ShapeDtypeStruct((B_pad, 2 * LATENT_DIM), jnp.float32)

    out = pl.pallas_call(
        encoder_kernel,
        grid=(nblk,),
        in_specs=in_specs,
        out_specs=out_spec,
        out_shape=out_shape,
        compiler_params=pltpu.CompilerParams(
            dimension_semantics=("parallel",)),   # batch blocks are independent
    )(x_lbc, cond_f, eps_f, *packed)

    z = out[:B, :LATENT_DIM]
    kl = jnp.sum(out[:B, LATENT_DIM:])
    return z, kl


# ---------------------- pure-JAX reference (for checking) ---------------------
def _mish_ref(x):
    return x * jnp.tanh(jax.nn.softplus(x))


def reference_forward(params, x_ncl, cond, eps):
    h = x_ncl.astype(jnp.float32)
    for (w, b, g, t) in params['conv']:
        h = jax.lax.conv_general_dilated(
            h, w, window_strides=(STRIDE,), padding=[(PAD, PAD)],
            dimension_numbers=('NCH', 'OIH', 'NCH'))
        h = h + b[None, :, None]
        mean = jnp.mean(h, axis=(1, 2), keepdims=True)
        var = jnp.mean((h - mean) ** 2, axis=(1, 2), keepdims=True)
        h = (h - mean) / jnp.sqrt(var + GN_EPS)
        h = h * g[None, :, None] + t[None, :, None]
        h = _mish_ref(h)
    flat = h.reshape(h.shape[0], -1)
    xc = jnp.concatenate([flat, cond], axis=-1)
    Wm, bm = params['fc_mu']
    Wv, bv = params['fc_var']
    mu = xc @ Wm.T + bm
    lv = xc @ Wv.T + bv
    sigma = jnp.exp(lv)
    z = mu + sigma * eps
    kl = BETA * jnp.sum(sigma ** 2 + mu ** 2 - lv - 0.5)
    return z, kl


if __name__ == "__main__":
    key = jax.random.PRNGKey(0)
    kp, kx, kc, ke = jax.random.split(key, 4)
    params = init_params(kp)

    B = 2
    x = jax.random.normal(kx, (B, INPUT_DIM, HORIZON), jnp.float32)   # PyTorch NCL
    cond = jax.random.normal(kc, (B, COND_DIM), jnp.float32)
    eps = jax.random.normal(ke, (B, LATENT_DIM), jnp.float32)         # N(0,1) sample

    z, kl = conv1d_encoder_forward(params, x, cond, eps)
    z = jax.block_until_ready(z)
    kl = jax.block_until_ready(kl)

    z_ref, kl_ref = reference_forward(params, x, cond, eps)
    np.testing.assert_allclose(np.asarray(z), np.asarray(z_ref), rtol=5e-3, atol=5e-3)
    np.testing.assert_allclose(float(kl), float(kl_ref), rtol=5e-3, atol=5e-3)

    print("KERNEL_OK")
</pallas_src>

<mosaic_0001>
module attributes {stable_mosaic.version = 11 : i64} {
  func.func @encoder_kernel(%arg0: i32, %arg1: memref<12x8x16xf32, #tpu.memory_space<vmem>>, %arg2: memref<8x36xf32, #tpu.memory_space<vmem>>, %arg3: memref<8x16xf32, #tpu.memory_space<vmem>>, %arg4: memref<51x32xf32, #tpu.memory_space<vmem>>, %arg5: memref<99x64xf32, #tpu.memory_space<vmem>>, %arg6: memref<195x128xf32, #tpu.memory_space<vmem>>, %arg7: memref<300x32xf32, #tpu.memory_space<vmem>>, %arg8: memref<8x32xf32, #tpu.memory_space<vmem>>) attributes {dimension_semantics = [#tpu.dimension_semantics<parallel>], iteration_bounds = array<i64: 1>, scalar_prefetch = 0 : i64, scratch_operands = 0 : i64, tpu.core_type = #tpu.core_type<tc>, window_params = [{transform_indices = @transform_0, window_bounds = array<i64: 12, 8, 16>}, {transform_indices = @transform_1, window_bounds = array<i64: 8, 36>}, {transform_indices = @transform_2, window_bounds = array<i64: 8, 16>}, {pipeline_mode = #tpu.pipeline_mode<synchronous>, transform_indices = @transform_3, window_bounds = array<i64: 51, 32>}, {pipeline_mode = #tpu.pipeline_mode<synchronous>, transform_indices = @transform_4, window_bounds = array<i64: 99, 64>}, {pipeline_mode = #tpu.pipeline_mode<synchronous>, transform_indices = @transform_5, window_bounds = array<i64: 195, 128>}, {pipeline_mode = #tpu.pipeline_mode<synchronous>, transform_indices = @transform_6, window_bounds = array<i64: 300, 32>}, {transform_indices = @transform_7, window_bounds = array<i64: 8, 32>}]} {
    %c0 = arith.constant 0 : index
    %c0_0 = arith.constant 0 : index
    %c0_1 = arith.constant 0 : index
    %0 = vector.load %arg1[%c0, %c0_0, %c0_1] : memref<12x8x16xf32, #tpu.memory_space<vmem>>, vector<12x8x16xf32>
    %c0_2 = arith.constant 0 : index
    %c0_3 = arith.constant 0 : index
    %1 = vector.load %arg4[%c0_2, %c0_3] : memref<51x32xf32, #tpu.memory_space<vmem>>, vector<51x32xf32>
    %2 = vector.extract_strided_slice %0 {offsets = [0, 0, 0], sizes = [1, 8, 16], strides = [1, 1, 1]} : vector<12x8x16xf32> to vector<1x8x16xf32>
    %3 = vector.shape_cast %2 : vector<1x8x16xf32> to vector<8x16xf32>
    %4 = vector.extract_strided_slice %0 {offsets = [2, 0, 0], sizes = [1, 8, 16], strides = [1, 1, 1]} : vector<12x8x16xf32> to vector<1x8x16xf32>
    %5 = vector.shape_cast %4 : vector<1x8x16xf32> to vector<8x16xf32>
    %6 = vector.extract_strided_slice %0 {offsets = [4, 0, 0], sizes = [1, 8, 16], strides = [1, 1, 1]} : vector<12x8x16xf32> to vector<1x8x16xf32>
    %7 = vector.shape_cast %6 : vector<1x8x16xf32> to vector<8x16xf32>
    %8 = vector.extract_strided_slice %0 {offsets = [6, 0, 0], sizes = [1, 8, 16], strides = [1, 1, 1]} : vector<12x8x16xf32> to vector<1x8x16xf32>
    %9 = vector.shape_cast %8 : vector<1x8x16xf32> to vector<8x16xf32>
    %10 = vector.extract_strided_slice %0 {offsets = [8, 0, 0], sizes = [1, 8, 16], strides = [1, 1, 1]} : vector<12x8x16xf32> to vector<1x8x16xf32>
    %11 = vector.shape_cast %10 : vector<1x8x16xf32> to vector<8x16xf32>
    %12 = tpu.concatenate %3, %5, %7, %9, %11 in 0 : vector<8x16xf32>, vector<8x16xf32>, vector<8x16xf32>, vector<8x16xf32>, vector<8x16xf32> -> vector<40x16xf32>
    %13 = vector.extract_strided_slice %1 {offsets = [0, 0], sizes = [16, 32], strides = [1, 1]} : vector<51x32xf32> to vector<16x32xf32>
    %cst = arith.constant dense<0.000000e+00> : vector<40x32xf32>
    %14 = tpu.matmul %12, %13, %cst {dimension_numbers = #tpu.dot_dimension_numbers<[1], [0], [0], [1], [0, 0, 1, 1], [], []>} : vector<40x16xf32>, vector<16x32xf32>, vector<40x32xf32> -> vector<40x32xf32>
    %15 = vector.extract_strided_slice %0 {offsets = [1, 0, 0], sizes = [1, 8, 16], strides = [1, 1, 1]} : vector<12x8x16xf32> to vector<1x8x16xf32>
    %16 = vector.shape_cast %15 : vector<1x8x16xf32> to vector<8x16xf32>
    %17 = vector.extract_strided_slice %0 {offsets = [3, 0, 0], sizes = [1, 8, 16], strides = [1, 1, 1]} : vector<12x8x16xf32> to vector<1x8x16xf32>
    %18 = vector.shape_cast %17 : vector<1x8x16xf32> to vector<8x16xf32>
    %19 = vector.extract_strided_slice %0 {offsets = [5, 0, 0], sizes = [1, 8, 16], strides = [1, 1, 1]} : vector<12x8x16xf32> to vector<1x8x16xf32>
    %20 = vector.shape_cast %19 : vector<1x8x16xf32> to vector<8x16xf32>
    %21 = vector.extract_strided_slice %0 {offsets = [7, 0, 0], sizes = [1, 8, 16], strides = [1, 1, 1]} : vector<12x8x16xf32> to vector<1x8x16xf32>
    %22 = vector.shape_cast %21 : vector<1x8x16xf32> to vector<8x16xf32>
    %23 = vector.extract_strided_slice %0 {offsets = [9, 0, 0], sizes = [1, 8, 16], strides = [1, 1, 1]} : vector<12x8x16xf32> to vector<1x8x16xf32>
    %24 = vector.shape_cast %23 : vector<1x8x16xf32> to vector<8x16xf32>
    %25 = tpu.concatenate %16, %18, %20, %22, %24 in 0 : vector<8x16xf32>, vector<8x16xf32>, vector<8x16xf32>, vector<8x16xf32>, vector<8x16xf32> -> vector<40x16xf32>
    %26 = vector.extract_strided_slice %1 {offsets = [16, 0], sizes = [16, 32], strides = [1, 1]} : vector<51x32xf32> to vector<16x32xf32>
    %cst_4 = arith.constant dense<0.000000e+00> : vector<40x32xf32>
    %27 = tpu.matmul %25, %26, %cst_4 {dimension_numbers = #tpu.dot_dimension_numbers<[1], [0], [0], [1], [0, 0, 1, 1], [], []>} : vector<40x16xf32>, vector<16x32xf32>, vector<40x32xf32> -> vector<40x32xf32>
    %28 = arith.addf %14, %27 : vector<40x32xf32>
    %29 = vector.extract_strided_slice %0 {offsets = [2, 0, 0], sizes = [1, 8, 16], strides = [1, 1, 1]} : vector<12x8x16xf32> to vector<1x8x16xf32>
    %30 = vector.shape_cast %29 : vector<1x8x16xf32> to vector<8x16xf32>
    %31 = vector.extract_strided_slice %0 {offsets = [4, 0, 0], sizes = [1, 8, 16], strides = [1, 1, 1]} : vector<12x8x16xf32> to vector<1x8x16xf32>
    %32 = vector.shape_cast %31 : vector<1x8x16xf32> to vector<8x16xf32>
    %33 = vector.extract_strided_slice %0 {offsets = [6, 0, 0], sizes = [1, 8, 16], strides = [1, 1, 1]} : vector<12x8x16xf32> to vector<1x8x16xf32>
    %34 = vector.shape_cast %33 : vector<1x8x16xf32> to vector<8x16xf32>
    %35 = vector.extract_strided_slice %0 {offsets = [8, 0, 0], sizes = [1, 8, 16], strides = [1, 1, 1]} : vector<12x8x16xf32> to vector<1x8x16xf32>
    %36 = vector.shape_cast %35 : vector<1x8x16xf32> to vector<8x16xf32>
    %37 = vector.extract_strided_slice %0 {offsets = [10, 0, 0], sizes = [1, 8, 16], strides = [1, 1, 1]} : vector<12x8x16xf32> to vector<1x8x16xf32>
    %38 = vector.shape_cast %37 : vector<1x8x16xf32> to vector<8x16xf32>
    %39 = tpu.concatenate %30, %32, %34, %36, %38 in 0 : vector<8x16xf32>, vector<8x16xf32>, vector<8x16xf32>, vector<8x16xf32>, vector<8x16xf32> -> vector<40x16xf32>
    %40 = vector.extract_strided_slice %1 {offsets = [32, 0], sizes = [16, 32], strides = [1, 1]} : vector<51x32xf32> to vector<16x32xf32>
    %cst_5 = arith.constant dense<0.000000e+00> : vector<40x32xf32>
    %41 = tpu.matmul %39, %40, %cst_5 {dimension_numbers = #tpu.dot_dimension_numbers<[1], [0], [0], [1], [0, 0, 1, 1], [], []>} : vector<40x16xf32>, vector<16x32xf32>, vector<40x32xf32> -> vector<40x32xf32>
    %42 = arith.addf %28, %41 : vector<40x32xf32>
    %43 = vector.extract_strided_slice %1 {offsets = [48, 0], sizes = [1, 32], strides = [1, 1]} : vector<51x32xf32> to vector<1x32xf32>
    %44 = vector.extract_strided_slice %1 {offsets = [49, 0], sizes = [1, 32], strides = [1, 1]} : vector<51x32xf32> to vector<1x32xf32>
    %45 = vector.extract_strided_slice %1 {offsets = [50, 0], sizes = [1, 32], strides = [1, 1]} : vector<51x32xf32> to vector<1x32xf32>
    %46 = vector.broadcast %43 : vector<1x32xf32> to vector<40x32xf32>
    %47 = arith.addf %42, %46 : vector<40x32xf32>
    %cst_6 = arith.constant 1.000000e+00 : f32
    %48 = vector.broadcast %cst_6 : f32 to vector<32x1xf32>
    %cst_7 = arith.constant dense<0.000000e+00> : vector<40x1xf32>
    %49 = tpu.matmul %47, %48, %cst_7 {dimension_numbers = #tpu.dot_dimension_numbers<[1], [0], [0], [1], [0, 0, 1, 1], [], []>} : vector<40x32xf32>, vector<32x1xf32>, vector<40x1xf32> -> vector<40x1xf32>
    %50 = vector.shape_cast %49 : vector<40x1xf32> to vector<5x8x1xf32>
    %cst_8 = arith.constant dense<0.000000e+00> : vector<8x1xf32>
    %51 = vector.multi_reduction <add>, %50, %cst_8 [0] : vector<5x8x1xf32> to vector<8x1xf32>
    %52 = vector.shape_cast %51 : vector<8x1xf32> to vector<1x8x1xf32>
    %cst_9 = arith.constant 6.250000e-03 : f32
    %53 = vector.broadcast %cst_9 : f32 to vector<1x8x1xf32>
    %54 = arith.mulf %52, %53 : vector<1x8x1xf32>
    %55 = vector.shape_cast %47 : vector<40x32xf32> to vector<5x8x32xf32>
    %56 = vector.broadcast %54 : vector<1x8x1xf32> to vector<5x8x32xf32>
    %57 = arith.subf %55, %56 : vector<5x8x32xf32>
    %58 = vector.shape_cast %57 : vector<5x8x32xf32> to vector<40x32xf32>
    %59 = arith.mulf %58, %58 : vector<40x32xf32>
    %cst_10 = arith.constant dense<0.000000e+00> : vector<40x1xf32>
    %60 = tpu.matmul %59, %48, %cst_10 {dimension_numbers = #tpu.dot_dimension_numbers<[1], [0], [0], [1], [0, 0, 1, 1], [], []>} : vector<40x32xf32>, vector<32x1xf32>, vector<40x1xf32> -> vector<40x1xf32>
    %61 = vector.shape_cast %60 : vector<40x1xf32> to vector<5x8x1xf32>
    %cst_11 = arith.constant dense<0.000000e+00> : vector<8x1xf32>
    %62 = vector.multi_reduction <add>, %61, %cst_11 [0] : vector<5x8x1xf32> to vector<8x1xf32>
    %63 = vector.shape_cast %62 : vector<8x1xf32> to vector<1x8x1xf32>
    %cst_12 = arith.constant 6.250000e-03 : f32
    %64 = vector.broadcast %cst_12 : f32 to vector<1x8x1xf32>
    %65 = arith.mulf %63, %64 : vector<1x8x1xf32>
    %cst_13 = arith.constant 9.99999974E-6 : f32
    %66 = vector.broadcast %cst_13 : f32 to vector<1x8x1xf32>
    %67 = arith.addf %65, %66 : vector<1x8x1xf32>
    %68 = math.rsqrt %67 : vector<1x8x1xf32>
    %69 = vector.broadcast %68 : vector<1x8x1xf32> to vector<5x8x32xf32>
    %70 = arith.mulf %57, %69 : vector<5x8x32xf32>
    %71 = vector.shape_cast %44 : vector<1x32xf32> to vector<1x1x32xf32>
    %72 = vector.broadcast %71 : vector<1x1x32xf32> to vector<5x8x32xf32>
    %73 = arith.mulf %70, %72 : vector<5x8x32xf32>
    %74 = vector.shape_cast %45 : vector<1x32xf32> to vector<1x1x32xf32>
    %75 = vector.broadcast %74 : vector<1x1x32xf32> to vector<5x8x32xf32>
    %76 = arith.addf %73, %75 : vector<5x8x32xf32>
    %cst_14 = arith.constant 2.000000e+01 : f32
    %77 = vector.broadcast %cst_14 : f32 to vector<5x8x32xf32>
    %78 = arith.minimumf %76, %77 : vector<5x8x32xf32>
    %79 = math.exp %78 : vector<5x8x32xf32>
    %cst_15 = arith.constant 2.000000e+00 : f32
    %80 = vector.broadcast %cst_15 : f32 to vector<5x8x32xf32>
    %81 = arith.addf %79, %80 : vector<5x8x32xf32>
    %82 = arith.mulf %79, %81 : vector<5x8x32xf32>
    %cst_16 = arith.constant 2.000000e+00 : f32
    %83 = vector.broadcast %cst_16 : f32 to vector<5x8x32xf32>
    %84 = arith.addf %82, %83 : vector<5x8x32xf32>
    %85 = arith.divf %82, %84 : vector<5x8x32xf32>
    %86 = arith.mulf %76, %85 : vector<5x8x32xf32>
    %cst_17 = arith.constant 0.000000e+00 : f32
    %87 = vector.broadcast %cst_17 : f32 to vector<1x8x32xf32>
    %88 = tpu.concatenate %87, %86, %87 in 0 : vector<1x8x32xf32>, vector<5x8x32xf32>, vector<1x8x32xf32> -> vector<7x8x32xf32>
    %c0_18 = arith.constant 0 : index
    %c0_19 = arith.constant 0 : index
    %89 = vector.load %arg5[%c0_18, %c0_19] : memref<99x64xf32, #tpu.memory_space<vmem>>, vector<99x64xf32>
    %90 = vector.extract_strided_slice %88 {offsets = [0, 0, 0], sizes = [1, 8, 32], strides = [1, 1, 1]} : vector<7x8x32xf32> to vector<1x8x32xf32>
    %91 = vector.shape_cast %90 : vector<1x8x32xf32> to vector<8x32xf32>
    %92 = vector.extract_strided_slice %88 {offsets = [2, 0, 0], sizes = [1, 8, 32], strides = [1, 1, 1]} : vector<7x8x32xf32> to vector<1x8x32xf32>
    %93 = vector.shape_cast %92 : vector<1x8x32xf32> to vector<8x32xf32>
    %94 = vector.extract_strided_slice %88 {offsets = [4, 0, 0], sizes = [1, 8, 32], strides = [1, 1, 1]} : vector<7x8x32xf32> to vector<1x8x32xf32>
    %95 = vector.shape_cast %94 : vector<1x8x32xf32> to vector<8x32xf32>
    %96 = tpu.concatenate %91, %93, %95 in 0 : vector<8x32xf32>, vector<8x32xf32>, vector<8x32xf32> -> vector<24x32xf32>
    %97 = vector.extract_strided_slice %89 {offsets = [0, 0], sizes = [32, 64], strides = [1, 1]} : vector<99x64xf32> to vector<32x64xf32>
    %cst_20 = arith.constant dense<0.000000e+00> : vector<24x64xf32>
    %98 = tpu.matmul %96, %97, %cst_20 {dimension_numbers = #tpu.dot_dimension_numbers<[1], [0], [0], [1], [0, 0, 1, 1], [], []>} : vector<24x32xf32>, vector<32x64xf32>, vector<24x64xf32> -> vector<24x64xf32>
    %99 = vector.extract_strided_slice %88 {offsets = [1, 0, 0], sizes = [1, 8, 32], strides = [1, 1, 1]} : vector<7x8x32xf32> to vector<1x8x32xf32>
    %100 = vector.shape_cast %99 : vector<1x8x32xf32> to vector<8x32xf32>
    %101 = vector.extract_strided_slice %88 {offsets = [3, 0, 0], sizes = [1, 8, 32], strides = [1, 1, 1]} : vector<7x8x32xf32> to vector<1x8x32xf32>
    %102 = vector.shape_cast %101 : vector<1x8x32xf32> to vector<8x32xf32>
    %103 = vector.extract_strided_slice %88 {offsets = [5, 0, 0], sizes = [1, 8, 32], strides = [1, 1, 1]} : vector<7x8x32xf32> to vector<1x8x32xf32>
    %104 = vector.shape_cast %103 : vector<1x8x32xf32> to vector<8x32xf32>
    %105 = tpu.concatenate %100, %102, %104 in 0 : vector<8x32xf32>, vector<8x32xf32>, vector<8x32xf32> -> vector<24x32xf32>
    %106 = vector.extract_strided_slice %89 {offsets = [32, 0], sizes = [32, 64], strides = [1, 1]} : vector<99x64xf32> to vector<32x64xf32>
    %cst_21 = arith.constant dense<0.000000e+00> : vector<24x64xf32>
    %107 = tpu.matmul %105, %106, %cst_21 {dimension_numbers = #tpu.dot_dimension_numbers<[1], [0], [0], [1], [0, 0, 1, 1], [], []>} : vector<24x32xf32>, vector<32x64xf32>, vector<24x64xf32> -> vector<24x64xf32>
    %108 = arith.addf %98, %107 : vector<24x64xf32>
    %109 = vector.extract_strided_slice %88 {offsets = [2, 0, 0], sizes = [1, 8, 32], strides = [1, 1, 1]} : vector<7x8x32xf32> to vector<1x8x32xf32>
    %110 = vector.shape_cast %109 : vector<1x8x32xf32> to vector<8x32xf32>
    %111 = vector.extract_strided_slice %88 {offsets = [4, 0, 0], sizes = [1, 8, 32], strides = [1, 1, 1]} : vector<7x8x32xf32> to vector<1x8x32xf32>
    %112 = vector.shape_cast %111 : vector<1x8x32xf32> to vector<8x32xf32>
    %113 = vector.extract_strided_slice %88 {offsets = [6, 0, 0], sizes = [1, 8, 32], strides = [1, 1, 1]} : vector<7x8x32xf32> to vector<1x8x32xf32>
    %114 = vector.shape_cast %113 : vector<1x8x32xf32> to vector<8x32xf32>
    %115 = tpu.concatenate %110, %112, %114 in 0 : vector<8x32xf32>, vector<8x32xf32>, vector<8x32xf32> -> vector<24x32xf32>
    %116 = vector.extract_strided_slice %89 {offsets = [64, 0], sizes = [32, 64], strides = [1, 1]} : vector<99x64xf32> to vector<32x64xf32>
    %cst_22 = arith.constant dense<0.000000e+00> : vector<24x64xf32>
    %117 = tpu.matmul %115, %116, %cst_22 {dimension_numbers = #tpu.dot_dimension_numbers<[1], [0], [0], [1], [0, 0, 1, 1], [], []>} : vector<24x32xf32>, vector<32x64xf32>, vector<24x64xf32> -> vector<24x64xf32>
    %118 = arith.addf %108, %117 : vector<24x64xf32>
    %119 = vector.extract_strided_slice %89 {offsets = [96, 0], sizes = [1, 64], strides = [1, 1]} : vector<99x64xf32> to vector<1x64xf32>
    %120 = vector.extract_strided_slice %89 {offsets = [97, 0], sizes = [1, 64], strides = [1, 1]} : vector<99x64xf32> to vector<1x64xf32>
    %121 = vector.extract_strided_slice %89 {offsets = [98, 0], sizes = [1, 64], strides = [1, 1]} : vector<99x64xf32> to vector<1x64xf32>
    %122 = vector.broadcast %119 : vector<1x64xf32> to vector<24x64xf32>
    %123 = arith.addf %118, %122 : vector<24x64xf32>
    %cst_23 = arith.constant 1.000000e+00 : f32
    %124 = vector.broadcast %cst_23 : f32 to vector<64x1xf32>
    %cst_24 = arith.constant dense<0.000000e+00> : vector<24x1xf32>
    %125 = tpu.matmul %123, %124, %cst_24 {dimension_numbers = #tpu.dot_dimension_numbers<[1], [0], [0], [1], [0, 0, 1, 1], [], []>} : vector<24x64xf32>, vector<64x1xf32>, vector<24x1xf32> -> vector<24x1xf32>
    %126 = vector.shape_cast %125 : vector<24x1xf32> to vector<3x8x1xf32>
    %cst_25 = arith.constant dense<0.000000e+00> : vector<8x1xf32>
    %127 = vector.multi_reduction <add>, %126, %cst_25 [0] : vector<3x8x1xf32> to vector<8x1xf32>
    %128 = vector.shape_cast %127 : vector<8x1xf32> to vector<1x8x1xf32>
    %cst_26 = arith.constant 0.00520833349 : f32
    %129 = vector.broadcast %cst_26 : f32 to vector<1x8x1xf32>
    %130 = arith.mulf %128, %129 : vector<1x8x1xf32>
    %131 = vector.shape_cast %123 : vector<24x64xf32> to vector<3x8x64xf32>
    %132 = vector.broadcast %130 : vector<1x8x1xf32> to vector<3x8x64xf32>
    %133 = arith.subf %131, %132 : vector<3x8x64xf32>
    %134 = vector.shape_cast %133 : vector<3x8x64xf32> to vector<24x64xf32>
    %135 = arith.mulf %134, %134 : vector<24x64xf32>
    %cst_27 = arith.constant dense<0.000000e+00> : vector<24x1xf32>
    %136 = tpu.matmul %135, %124, %cst_27 {dimension_numbers = #tpu.dot_dimension_numbers<[1], [0], [0], [1], [0, 0, 1, 1], [], []>} : vector<24x64xf32>, vector<64x1xf32>, vector<24x1xf32> -> vector<24x1xf32>
    %137 = vector.shape_cast %136 : vector<24x1xf32> to vector<3x8x1xf32>
    %cst_28 = arith.constant dense<0.000000e+00> : vector<8x1xf32>
    %138 = vector.multi_reduction <add>, %137, %cst_28 [0] : vector<3x8x1xf32> to vector<8x1xf32>
    %139 = vector.shape_cast %138 : vector<8x1xf32> to vector<1x8x1xf32>
    %cst_29 = arith.constant 0.00520833349 : f32
    %140 = vector.broadcast %cst_29 : f32 to vector<1x8x1xf32>
    %141 = arith.mulf %139, %140 : vector<1x8x1xf32>
    %cst_30 = arith.constant 9.99999974E-6 : f32
    %142 = vector.broadcast %cst_30 : f32 to vector<1x8x1xf32>
    %143 = arith.addf %141, %142 : vector<1x8x1xf32>
    %144 = math.rsqrt %143 : vector<1x8x1xf32>
    %145 = vector.broadcast %144 : vector<1x8x1xf32> to vector<3x8x64xf32>
    %146 = arith.mulf %133, %145 : vector<3x8x64xf32>
    %147 = vector.shape_cast %120 : vector<1x64xf32> to vector<1x1x64xf32>
    %148 = vector.broadcast %147 : vector<1x1x64xf32> to vector<3x8x64xf32>
    %149 = arith.mulf %146, %148 : vector<3x8x64xf32>
    %150 = vector.shape_cast %121 : vector<1x64xf32> to vector<1x1x64xf32>
    %151 = vector.broadcast %150 : vector<1x1x64xf32> to vector<3x8x64xf32>
    %152 = arith.addf %149, %151 : vector<3x8x64xf32>
    %cst_31 = arith.constant 2.000000e+01 : f32
    %153 = vector.broadcast %cst_31 : f32 to vector<3x8x64xf32>
    %154 = arith.minimumf %152, %153 : vector<3x8x64xf32>
    %155 = math.exp %154 : vector<3x8x64xf32>
    %cst_32 = arith.constant 2.000000e+00 : f32
    %156 = vector.broadcast %cst_32 : f32 to vector<3x8x64xf32>
    %157 = arith.addf %155, %156 : vector<3x8x64xf32>
    %158 = arith.mulf %155, %157 : vector<3x8x64xf32>
    %cst_33 = arith.constant 2.000000e+00 : f32
    %159 = vector.broadcast %cst_33 : f32 to vector<3x8x64xf32>
    %160 = arith.addf %158, %159 : vector<3x8x64xf32>
    %161 = arith.divf %158, %160 : vector<3x8x64xf32>
    %162 = arith.mulf %152, %161 : vector<3x8x64xf32>
    %cst_34 = arith.constant 0.000000e+00 : f32
    %163 = vector.broadcast %cst_34 : f32 to vector<1x8x64xf32>
    %164 = tpu.concatenate %163, %162, %163 in 0 : vector<1x8x64xf32>, vector<3x8x64xf32>, vector<1x8x64xf32> -> vector<5x8x64xf32>
    %c0_35 = arith.constant 0 : index
    %c0_36 = arith.constant 0 : index
    %165 = vector.load %arg6[%c0_35, %c0_36] : memref<195x128xf32, #tpu.memory_space<vmem>>, vector<195x128xf32>
    %166 = vector.extract_strided_slice %164 {offsets = [0, 0, 0], sizes = [1, 8, 64], strides = [1, 1, 1]} : vector<5x8x64xf32> to vector<1x8x64xf32>
    %167 = vector.shape_cast %166 : vector<1x8x64xf32> to vector<8x64xf32>
    %168 = vector.extract_strided_slice %164 {offsets = [2, 0, 0], sizes = [1, 8, 64], strides = [1, 1, 1]} : vector<5x8x64xf32> to vector<1x8x64xf32>
    %169 = vector.shape_cast %168 : vector<1x8x64xf32> to vector<8x64xf32>
    %170 = tpu.concatenate %167, %169 in 0 : vector<8x64xf32>, vector<8x64xf32> -> vector<16x64xf32>
    %171 = vector.extract_strided_slice %165 {offsets = [0, 0], sizes = [64, 128], strides = [1, 1]} : vector<195x128xf32> to vector<64x128xf32>
    %cst_37 = arith.constant dense<0.000000e+00> : vector<16x128xf32>
    %172 = tpu.matmul %170, %171, %cst_37 {dimension_numbers = #tpu.dot_dimension_numbers<[1], [0], [0], [1], [0, 0, 1, 1], [], []>} : vector<16x64xf32>, vector<64x128xf32>, vector<16x128xf32> -> vector<16x128xf32>
    %173 = vector.extract_strided_slice %164 {offsets = [1, 0, 0], sizes = [1, 8, 64], strides = [1, 1, 1]} : vector<5x8x64xf32> to vector<1x8x64xf32>
    %174 = vector.shape_cast %173 : vector<1x8x64xf32> to vector<8x64xf32>
    %175 = vector.extract_strided_slice %164 {offsets = [3, 0, 0], sizes = [1, 8, 64], strides = [1, 1, 1]} : vector<5x8x64xf32> to vector<1x8x64xf32>
    %176 = vector.shape_cast %175 : vector<1x8x64xf32> to vector<8x64xf32>
    %177 = tpu.concatenate %174, %176 in 0 : vector<8x64xf32>, vector<8x64xf32> -> vector<16x64xf32>
    %178 = vector.extract_strided_slice %165 {offsets = [64, 0], sizes = [64, 128], strides = [1, 1]} : vector<195x128xf32> to vector<64x128xf32>
    %cst_38 = arith.constant dense<0.000000e+00> : vector<16x128xf32>
    %179 = tpu.matmul %177, %178, %cst_38 {dimension_numbers = #tpu.dot_dimension_numbers<[1], [0], [0], [1], [0, 0, 1, 1], [], []>} : vector<16x64xf32>, vector<64x128xf32>, vector<16x128xf32> -> vector<16x128xf32>
    %180 = arith.addf %172, %179 : vector<16x128xf32>
    %181 = vector.extract_strided_slice %164 {offsets = [2, 0, 0], sizes = [1, 8, 64], strides = [1, 1, 1]} : vector<5x8x64xf32> to vector<1x8x64xf32>
    %182 = vector.shape_cast %181 : vector<1x8x64xf32> to vector<8x64xf32>
    %183 = vector.extract_strided_slice %164 {offsets = [4, 0, 0], sizes = [1, 8, 64], strides = [1, 1, 1]} : vector<5x8x64xf32> to vector<1x8x64xf32>
    %184 = vector.shape_cast %183 : vector<1x8x64xf32> to vector<8x64xf32>
    %185 = tpu.concatenate %182, %184 in 0 : vector<8x64xf32>, vector<8x64xf32> -> vector<16x64xf32>
    %186 = vector.extract_strided_slice %165 {offsets = [128, 0], sizes = [64, 128], strides = [1, 1]} : vector<195x128xf32> to vector<64x128xf32>
    %cst_39 = arith.constant dense<0.000000e+00> : vector<16x128xf32>
    %187 = tpu.matmul %185, %186, %cst_39 {dimension_numbers = #tpu.dot_dimension_numbers<[1], [0], [0], [1], [0, 0, 1, 1], [], []>} : vector<16x64xf32>, vector<64x128xf32>, vector<16x128xf32> -> vector<16x128xf32>
    %188 = arith.addf %180, %187 : vector<16x128xf32>
    %189 = vector.extract_strided_slice %165 {offsets = [192, 0], sizes = [1, 128], strides = [1, 1]} : vector<195x128xf32> to vector<1x128xf32>
    %190 = vector.extract_strided_slice %165 {offsets = [193, 0], sizes = [1, 128], strides = [1, 1]} : vector<195x128xf32> to vector<1x128xf32>
    %191 = vector.extract_strided_slice %165 {offsets = [194, 0], sizes = [1, 128], strides = [1, 1]} : vector<195x128xf32> to vector<1x128xf32>
    %192 = vector.broadcast %189 : vector<1x128xf32> to vector<16x128xf32>
    %193 = arith.addf %188, %192 : vector<16x128xf32>
    %cst_40 = arith.constant 1.000000e+00 : f32
    %194 = vector.broadcast %cst_40 : f32 to vector<128x1xf32>
    %cst_41 = arith.constant dense<0.000000e+00> : vector<16x1xf32>
    %195 = tpu.matmul %193, %194, %cst_41 {dimension_numbers = #tpu.dot_dimension_numbers<[1], [0], [0], [1], [0, 0, 1, 1], [], []>} : vector<16x128xf32>, vector<128x1xf32>, vector<16x1xf32> -> vector<16x1xf32>
    %196 = vector.shape_cast %195 : vector<16x1xf32> to vector<2x8x1xf32>
    %cst_42 = arith.constant dense<0.000000e+00> : vector<8x1xf32>
    %197 = vector.multi_reduction <add>, %196, %cst_42 [0] : vector<2x8x1xf32> to vector<8x1xf32>
    %198 = vector.shape_cast %197 : vector<8x1xf32> to vector<1x8x1xf32>
    %cst_43 = arith.constant 3.906250e-03 : f32
    %199 = vector.broadcast %cst_43 : f32 to vector<1x8x1xf32>
    %200 = arith.mulf %198, %199 : vector<1x8x1xf32>
    %201 = vector.shape_cast %193 : vector<16x128xf32> to vector<2x8x128xf32>
    %202 = vector.broadcast %200 : vector<1x8x1xf32> to vector<2x8x128xf32>
    %203 = arith.subf %201, %202 : vector<2x8x128xf32>
    %204 = vector.shape_cast %203 : vector<2x8x128xf32> to vector<16x128xf32>
    %205 = arith.mulf %204, %204 : vector<16x128xf32>
    %cst_44 = arith.constant dense<0.000000e+00> : vector<16x1xf32>
    %206 = tpu.matmul %205, %194, %cst_44 {dimension_numbers = #tpu.dot_dimension_numbers<[1], [0], [0], [1], [0, 0, 1, 1], [], []>} : vector<16x128xf32>, vector<128x1xf32>, vector<16x1xf32> -> vector<16x1xf32>
    %207 = vector.shape_cast %206 : vector<16x1xf32> to vector<2x8x1xf32>
    %cst_45 = arith.constant dense<0.000000e+00> : vector<8x1xf32>
    %208 = vector.multi_reduction <add>, %207, %cst_45 [0] : vector<2x8x1xf32> to vector<8x1xf32>
    %209 = vector.shape_cast %208 : vector<8x1xf32> to vector<1x8x1xf32>
    %cst_46 = arith.constant 3.906250e-03 : f32
    %210 = vector.broadcast %cst_46 : f32 to vector<1x8x1xf32>
    %211 = arith.mulf %209, %210 : vector<1x8x1xf32>
    %cst_47 = arith.constant 9.99999974E-6 : f32
    %212 = vector.broadcast %cst_47 : f32 to vector<1x8x1xf32>
    %213 = arith.addf %211, %212 : vector<1x8x1xf32>
    %214 = math.rsqrt %213 : vector<1x8x1xf32>
    %215 = vector.broadcast %214 : vector<1x8x1xf32> to vector<2x8x128xf32>
    %216 = arith.mulf %203, %215 : vector<2x8x128xf32>
    %217 = vector.shape_cast %190 : vector<1x128xf32> to vector<1x1x128xf32>
    %218 = vector.broadcast %217 : vector<1x1x128xf32> to vector<2x8x128xf32>
    %219 = arith.mulf %216, %218 : vector<2x8x128xf32>
    %220 = vector.shape_cast %191 : vector<1x128xf32> to vector<1x1x128xf32>
    %221 = vector.broadcast %220 : vector<1x1x128xf32> to vector<2x8x128xf32>
    %222 = arith.addf %219, %221 : vector<2x8x128xf32>
    %cst_48 = arith.constant 2.000000e+01 : f32
    %223 = vector.broadcast %cst_48 : f32 to vector<2x8x128xf32>
    %224 = arith.minimumf %222, %223 : vector<2x8x128xf32>
    %225 = math.exp %224 : vector<2x8x128xf32>
    %cst_49 = arith.constant 2.000000e+00 : f32
    %226 = vector.broadcast %cst_49 : f32 to vector<2x8x128xf32>
    %227 = arith.addf %225, %226 : vector<2x8x128xf32>
    %228 = arith.mulf %225, %227 : vector<2x8x128xf32>
    %cst_50 = arith.constant 2.000000e+00 : f32
    %229 = vector.broadcast %cst_50 : f32 to vector<2x8x128xf32>
    %230 = arith.addf %228, %229 : vector<2x8x128xf32>
    %231 = arith.divf %228, %230 : vector<2x8x128xf32>
    %232 = arith.mulf %222, %231 : vector<2x8x128xf32>
    %c0_51 = arith.constant 0 : index
    %c0_52 = arith.constant 0 : index
    %233 = vector.load %arg7[%c0_51, %c0_52] : memref<300x32xf32, #tpu.memory_space<vmem>>, vector<300x32xf32>
    %234 = vector.extract_strided_slice %233 {offsets = [0, 0], sizes = [1, 32], strides = [1, 1]} : vector<300x32xf32> to vector<1x32xf32>
    %235 = vector.extract_strided_slice %233 {offsets = [264, 0], sizes = [36, 32], strides = [1, 1]} : vector<300x32xf32> to vector<36x32xf32>
    %c0_53 = arith.constant 0 : index
    %c0_54 = arith.constant 0 : index
    %236 = vector.load %arg2[%c0_53, %c0_54] : memref<8x36xf32, #tpu.memory_space<vmem>>, vector<8x36xf32>
    %cst_55 = arith.constant dense<0.000000e+00> : vector<8x32xf32>
    %237 = tpu.matmul %236, %235, %cst_55 {dimension_numbers = #tpu.dot_dimension_numbers<[1], [0], [0], [1], [0, 0, 1, 1], [], []>} : vector<8x36xf32>, vector<36x32xf32>, vector<8x32xf32> -> vector<8x32xf32>
    %238 = vector.broadcast %234 : vector<1x32xf32> to vector<8x32xf32>
    %239 = arith.addf %237, %238 : vector<8x32xf32>
    %240 = vector.extract_strided_slice %233 {offsets = [8, 0], sizes = [128, 32], strides = [1, 1]} : vector<300x32xf32> to vector<128x32xf32>
    %241 = vector.extract_strided_slice %232 {offsets = [0, 0, 0], sizes = [1, 8, 128], strides = [1, 1, 1]} : vector<2x8x128xf32> to vector<1x8x128xf32>
    %242 = vector.shape_cast %241 : vector<1x8x128xf32> to vector<8x128xf32>
    %cst_56 = arith.constant dense<0.000000e+00> : vector<8x32xf32>
    %243 = tpu.matmul %242, %240, %cst_56 {dimension_numbers = #tpu.dot_dimension_numbers<[1], [0], [0], [1], [0, 0, 1, 1], [], []>} : vector<8x128xf32>, vector<128x32xf32>, vector<8x32xf32> -> vector<8x32xf32>
    %244 = arith.addf %239, %243 : vector<8x32xf32>
    %245 = vector.extract_strided_slice %233 {offsets = [136, 0], sizes = [128, 32], strides = [1, 1]} : vector<300x32xf32> to vector<128x32xf32>
    %246 = vector.extract_strided_slice %232 {offsets = [1, 0, 0], sizes = [1, 8, 128], strides = [1, 1, 1]} : vector<2x8x128xf32> to vector<1x8x128xf32>
    %247 = vector.shape_cast %246 : vector<1x8x128xf32> to vector<8x128xf32>
    %cst_57 = arith.constant dense<0.000000e+00> : vector<8x32xf32>
    %248 = tpu.matmul %247, %245, %cst_57 {dimension_numbers = #tpu.dot_dimension_numbers<[1], [0], [0], [1], [0, 0, 1, 1], [], []>} : vector<8x128xf32>, vector<128x32xf32>, vector<8x32xf32> -> vector<8x32xf32>
    %249 = arith.addf %244, %248 : vector<8x32xf32>
    %250 = vector.extract_strided_slice %249 {offsets = [0, 0], sizes = [8, 16], strides = [1, 1]} : vector<8x32xf32> to vector<8x16xf32>
    %251 = vector.extract_strided_slice %249 {offsets = [0, 16], sizes = [8, 16], strides = [1, 1]} : vector<8x32xf32> to vector<8x16xf32>
    %252 = math.exp %251 : vector<8x16xf32>
    %c0_58 = arith.constant 0 : index
    %c0_59 = arith.constant 0 : index
    %253 = vector.load %arg3[%c0_58, %c0_59] : memref<8x16xf32, #tpu.memory_space<vmem>>, vector<8x16xf32>
    %254 = arith.mulf %252, %253 : vector<8x16xf32>
    %255 = arith.addf %250, %254 : vector<8x16xf32>
    %256 = arith.mulf %252, %252 : vector<8x16xf32>
    %257 = arith.mulf %250, %250 : vector<8x16xf32>
    %258 = arith.addf %256, %257 : vector<8x16xf32>
    %259 = arith.subf %258, %251 : vector<8x16xf32>
    %cst_60 = arith.constant 5.000000e-01 : f32
    %260 = vector.broadcast %cst_60 : f32 to vector<8x16xf32>
    %261 = arith.subf %259, %260 : vector<8x16xf32>
    %cst_61 = arith.constant 9.99999974E-6 : f32
    %262 = vector.broadcast %cst_61 : f32 to vector<8x16xf32>
    %263 = arith.mulf %262, %261 : vector<8x16xf32>
    %264 = tpu.concatenate %255, %263 in 1 : vector<8x16xf32>, vector<8x16xf32> -> vector<8x32xf32>
    %c0_62 = arith.constant 0 : index
    %c0_63 = arith.constant 0 : index
    %265 = vector.load %arg8[%c0_62, %c0_63] : memref<8x32xf32, #tpu.memory_space<vmem>>, vector<8x32xf32>
    tpu.vector_store %arg8[%c0_62, %c0_63], %264 {strides = array<i32>} : memref<8x32xf32, #tpu.memory_space<vmem>>, vector<8x32xf32>,
    return
  }
  func.func @transform_0(%arg0: i32) -> (i32, i32, i32) {
    %c0_i32 = arith.constant 0 : i32
    %c0_i32_0 = arith.constant 0 : i32
    %c0_i32_1 = arith.constant 0 : i32
    return %c0_i32, %arg0, %c0_i32_0 : i32, i32, i32
  }
  func.func @transform_1(%arg0: i32) -> (i32, i32) {
    %c0_i32 = arith.constant 0 : i32
    %c0_i32_0 = arith.constant 0 : i32
    return %arg0, %c0_i32 : i32, i32
  }
  func.func @transform_2(%arg0: i32) -> (i32, i32) {
    %c0_i32 = arith.constant 0 : i32
    %c0_i32_0 = arith.constant 0 : i32
    return %arg0, %c0_i32 : i32, i32
  }
  func.func @transform_3(%arg0: i32) -> (i32, i32) {
    %c0_i32 = arith.constant 0 : i32
    %c0_i32_0 = arith.constant 0 : i32
    %c0_i32_1 = arith.constant 0 : i32
    return %c0_i32, %c0_i32_0 : i32, i32
  }
  func.func @transform_4(%arg0: i32) -> (i32, i32) {
    %c0_i32 = arith.constant 0 : i32
    %c0_i32_0 = arith.constant 0 : i32
    %c0_i32_1 = arith.constant 0 : i32
    return %c0_i32, %c0_i32_0 : i32, i32
  }
  func.func @transform_5(%arg0: i32) -> (i32, i32) {
    %c0_i32 = arith.constant 0 : i32
    %c0_i32_0 = arith.constant 0 : i32
    %c0_i32_1 = arith.constant 0 : i32
    return %c0_i32, %c0_i32_0 : i32, i32
  }
  func.func @transform_6(%arg0: i32) -> (i32, i32) {
    %c0_i32 = arith.constant 0 : i32
    %c0_i32_0 = arith.constant 0 : i32
    %c0_i32_1 = arith.constant 0 : i32
    return %c0_i32, %c0_i32_0 : i32, i32
  }
  func.func @transform_7(%arg0: i32) -> (i32, i32) {
    %c0_i32 = arith.constant 0 : i32
    %c0_i32_0 = arith.constant 0 : i32
    return %arg0, %c0_i32 : i32, i32
  }
}

</mosaic_0001>

<llo_original>
// kernel: tpu_custom_call.1
$region0: #{tpu_custom_call.1}
  #allocation0 [shape = 'u32[]', space=smem, size = 0x4, offset = 0x4, fixed_abs, tag = 'smem constant byte address 0x4 - core index']
  #allocation1 [shape = 'u32[144,128]{1,0:T(1,128)}', space=vmem, size = 0x12000, scoped, tag = 'internal scratch']
  %s0 = inlined_call_operand.vmem [shape: f32[12,8,16], index: 0, kind: input, shape index: {}]
  %s1 = inlined_call_operand.vmem [shape: f32[8,36], index: 1, kind: input, shape index: {}]
  %s2 = inlined_call_operand.vmem [shape: f32[8,16], index: 2, kind: input, shape index: {}]
  %s3 = inlined_call_operand.vmem [shape: f32[51,32], index: 3, kind: input, shape index: {}]
  %s4 = inlined_call_operand.vmem [shape: f32[99,64], index: 4, kind: input, shape index: {}]
  %s5 = inlined_call_operand.vmem [shape: f32[195,128], index: 5, kind: input, shape index: {}]
  %s6 = inlined_call_operand.vmem [shape: f32[300,32], index: 6, kind: input, shape index: {}]
  %s7 = inlined_call_operand.hbm [shape: f32[8,32], index: 7, kind: output, shape index: {}]
  %s8 = sld [smem:[#allocation0]]
  $region38: #{tpu_custom_call.1} parent=0
    _
  %s10 = ssub.s32 1, %s8
  %s11 = scalar_select 0, %s10, %s8
  $region1: #{tpu_custom_call.1} parent=0
    #allocation2 [shape = 'u8[4096]{0}', space=vmem, size = 0x1000, scoped, tag = 'output window, operand 0, single buffered']
    #allocation3 [shape = 's32[1]{0}', space=sflag, size = 0x4, scoped, tag = 'scoped memory for tpu_custom_call.1']
    %12 = vsyncpa [#allocation3], 0
    // Predicated region
    $region2: #{tpu_custom_call.1} parent=1 // pred_check
      _
    $region3: #{tpu_custom_call.1} parent=1 // pred_check_branch
      %14 = sbr.rel (0) target = $region5
    $region4: #{tpu_custom_call.1} parent=1 // pred_region
      _
    $region5: #{tpu_custom_call.1} parent=1 // pred_fallthru
      _
    // Predicated region
    $region6: #{tpu_custom_call.1} parent=1 // pred_check
      _
    $region7: #{tpu_custom_call.1} parent=1 // pred_check_branch
      %16 = sbr.rel (0) target = $region9
    $region8: #{tpu_custom_call.1} parent=1 // pred_region
      _
    $region9: #{tpu_custom_call.1} parent=1 // pred_fallthru
      _
    // Predicated region
    $region10: #{tpu_custom_call.1} parent=1 // pred_check
      _
    $region11: #{tpu_custom_call.1} parent=1 // pred_check_branch
      %18 = sbr.rel (0) target = $region13
    $region12: #{tpu_custom_call.1} parent=1 // pred_region
      _
    $region13: #{tpu_custom_call.1} parent=1 // pred_fallthru
      _
    // Predicated region
    $region14: #{tpu_custom_call.1} parent=1 // pred_check
      _
    $region15: #{tpu_custom_call.1} parent=1 // pred_check_branch
      %20 = sbr.rel (0) target = $region17
    $region16: #{tpu_custom_call.1} parent=1 // pred_region
      _
    $region17: #{tpu_custom_call.1} parent=1 // pred_fallthru
      _
    // Predicated region
    $region18: #{tpu_custom_call.1} parent=1 // pred_check
      _
    $region19: #{tpu_custom_call.1} parent=1 // pred_check_branch
      %22 = sbr.rel (0) target = $region21
    $region20: #{tpu_custom_call.1} parent=1 // pred_region
      _
    $region21: #{tpu_custom_call.1} parent=1 // pred_fallthru
      _
    // Predicated region
    $region22: #{tpu_custom_call.1} parent=1 // pred_check
      _
    $region23: #{tpu_custom_call.1} parent=1 // pred_check_branch
      %24 = sbr.rel (0) target = $region25
    $region24: #{tpu_custom_call.1} parent=1 // pred_region
      _
    $region25: #{tpu_custom_call.1} parent=1 // pred_fallthru
      _
    // Predicated region
    $region26: #{tpu_custom_call.1} parent=1 // pred_check
      _
    $region27: #{tpu_custom_call.1} parent=1 // pred_check_branch
      %26 = sbr.rel (0) target = $region29
    $region28: #{tpu_custom_call.1} parent=1 // pred_region
      _
    $region29: #{tpu_custom_call.1} parent=1 // pred_fallthru
      _
    %v27 = vld [vmem:[%s0] sm:$0xff]
    %v28 = vld [vmem:[%s0 + $0x8] sm:$0xff]
    %v29 = vld [vmem:[%s0 + $0x10] sm:$0xff]
    %v30 = vld [vmem:[%s0 + $0x18] sm:$0xff]
    %v31 = vld [vmem:[%s0 + $0x20] sm:$0xff]
    %v32 = vld [vmem:[%s0 + $0x28] sm:$0xff]
    %v33 = vld [vmem:[%s0 + $0x30] sm:$0xff]
    %v34 = vld [vmem:[%s0 + $0x38] sm:$0xff]
    %v35 = vld [vmem:[%s0 + $0x40] sm:$0xff]
    %v36 = vld [vmem:[%s0 + $0x48] sm:$0xff]
    %v37 = vld [vmem:[%s0 + $0x50] sm:$0xff]
    %v38 = vld [vmem:[%s3] sm:$0xff]
    %v39 = vld [vmem:[%s3 + $0x8] sm:$0xff]
    %v40 = vld [vmem:[%s3 + $0x10] sm:$0xff]
    %v41 = vld [vmem:[%s3 + $0x18] sm:$0xff]
    %v42 = vld [vmem:[%s3 + $0x20] sm:$0xff]
    %v43 = vld [vmem:[%s3 + $0x28] sm:$0xff]
    %v44 = vld [vmem:[%s3 + $0x30] sm:$0x7]
    %vm45 = vcmask 130048
    %v47 = vsel %vm45, %v28, 0
    %v50 = vsel %vm45, %v30, 0
    %v53 = vsel %vm45, %v32, 0
    %v56 = vsel %vm45, %v34, 0
    %v59 = vsel %vm45, %v36, 0
    %61 = vmatprep.subr.mxu0 0.0
    %62 = vmatpush1.msra.mxu0 0.0
    %63 = vmatprep.subr.mxu0 0.0
    %64 = vmatpush1.msra.mxu0 0.0
    %65 = vmatprep.subr.mxu0 0.0
    %66 = vmatpush1.msra.mxu0 0.0
    %67 = vmatprep.subr.mxu0 0.0
    %68 = vmatpush1.msra.mxu0 0.0
    %69 = vmatprep.subr.mxu0 0.0
    %70 = vmatpush1.msra.mxu0 0.0
    %71 = vmatprep.subr.mxu0 0.0
    %72 = vmatpush1.msra.mxu0 0.0
    %73 = vmatprep.subr.mxu0 0.0
    %74 = vmatpush1.msra.mxu0 0.0
    %75 = vmatprep.subr.mxu0 0.0
    %76 = vmatpush1.msra.mxu0 0.0
    %77 = vmatprep.subr.mxu0 0.0
    %78 = vmatpush1.msra.mxu0 0.0
    %79 = vmatprep.subr.mxu0 0.0
    %80 = vmatpush1.msra.mxu0 0.0
    %81 = vmatprep.subr.mxu0 0.0
    %82 = vmatpush1.msra.mxu0 0.0
    %83 = vmatprep.subr.mxu0 0.0
    %84 = vmatpush1.msra.mxu0 0.0
    %85 = vmatprep.subr.mxu0 0.0
    %86 = vmatpush1.msra.mxu0 0.0
    %87 = vmatprep.subr.mxu0 0.0
    %88 = vmatpush1.msra.mxu0 0.0
    %89 = vmatprep.subr.mxu0 0.0
    %90 = vmatpush1.msra.mxu0 %v41
    %91 = vmatprep.subr.mxu0 0.0
    %92 = vmatpush1.msra.mxu0 %v40
    %93 = vmatprep.subr.mxu0 0.0
    %94 = vmatpush2.msra.mxu0 0.0
    %95 = vmatprep.subr.mxu0 0.0
    %96 = vmatpush2.msra.mxu0 0.0
    %97 = vmatprep.subr.mxu0 0.0
    %98 = vmatpush2.msra.mxu0 0.0
    %99 = vmatprep.subr.mxu0 0.0
    %100 = vmatpush2.msra.mxu0 0.0
    %101 = vmatprep.subr.mxu0 0.0
    %102 = vmatpush2.msra.mxu0 0.0
    %103 = vmatprep.subr.mxu0 0.0
    %104 = vmatpush2.msra.mxu0 0.0
    %105 = vmatprep.subr.mxu0 0.0
    %106 = vmatpush2.msra.mxu0 0.0
    %107 = vmatprep.subr.mxu0 0.0
    %108 = vmatpush2.msra.mxu0 0.0
    %109 = vmatprep.subr.mxu0 0.0
    %110 = vmatpush2.msra.mxu0 0.0
    %111 = vmatprep.subr.mxu0 0.0
    %112 = vmatpush2.msra.mxu0 0.0
    %113 = vmatprep.subr.mxu0 0.0
    %114 = vmatpush2.msra.mxu0 0.0
    %115 = vmatprep.subr.mxu0 0.0
    %116 = vmatpush2.msra.mxu0 0.0
    %117 = vmatprep.subr.mxu0 0.0
    %118 = vmatpush2.msra.mxu0 0.0
    %119 = vmatprep.subr.mxu0 0.0
    %120 = vmatpush2.msra.mxu0 0.0
    %121 = vmatprep.subr.mxu0 0.0
    %122 = vmatpush2.msra.mxu0 0.0
    %123 = vmatprep.subr.mxu0 0.0
    %124 = vmatpush2.msra.mxu0 0.0
    %125 = vmatprep.mubr.f32.mxu0 0.0
    %126 = vmatmul.mubr.f32.gmra.mxu0 %v47
    %v127 = vpop.f32.mrf.mxu0
    %v128 = vadd.f32 0.0, %v127
    %v129 = vpop.f32.mrf.mxu0
    %130 = vmatprep.mubr.f32.mxu0 0.0
    %131 = vmatmul.mubr.f32.gmra.mxu0 %v50
    %v132 = vpop.f32.mrf.mxu0
    %v133 = vadd.f32 0.0, %v132
    %v134 = vpop.f32.mrf.mxu0
    %135 = vmatprep.mubr.f32.mxu0 0.0
    %136 = vmatmul.mubr.f32.gmra.mxu0 %v53
    %v137 = vpop.f32.mrf.mxu0
    %v138 = vadd.f32 0.0, %v137
    %v139 = vpop.f32.mrf.mxu0
    %140 = vmatprep.mubr.f32.mxu0 0.0
    %141 = vmatmul.mubr.f32.gmra.mxu0 %v56
    %v142 = vpop.f32.mrf.mxu0
    %v143 = vadd.f32 0.0, %v142
    %v144 = vpop.f32.mrf.mxu0
    %145 = vmatprep.mubr.f32.mxu0 0.0
    %146 = vmatmul.mubr.f32.gmra.mxu0 %v59
    %v147 = vpop.f32.mrf.mxu0
    %v148 = vadd.f32 0.0, %v147
    %v149 = vpop.f32.mrf.mxu0
    %150 = vdwg.mxu0
    %v152 = vsel %vm45, %v27, 0
    %v155 = vsel %vm45, %v29, 0
    %v158 = vsel %vm45, %v31, 0
    %v161 = vsel %vm45, %v33, 0
    %v164 = vsel %vm45, %v35, 0
    %166 = vmatprep.subr.mxu0 0.0
    %167 = vmatpush1.msra.mxu0 0.0
    %168 = vmatprep.subr.mxu0 0.0
    %169 = vmatpush1.msra.mxu0 0.0
    %170 = vmatprep.subr.mxu0 0.0
    %171 = vmatpush1.msra.mxu0 0.0
    %172 = vmatprep.subr.mxu0 0.0
    %173 = vmatpush1.msra.mxu0 0.0
    %174 = vmatprep.subr.mxu0 0.0
    %175 = vmatpush1.msra.mxu0 0.0
    %176 = vmatprep.subr.mxu0 0.0
    %177 = vmatpush1.msra.mxu0 0.0
    %178 = vmatprep.subr.mxu0 0.0
    %179 = vmatpush1.msra.mxu0 0.0
    %180 = vmatprep.subr.mxu0 0.0
    %181 = vmatpush1.msra.mxu0 0.0
    %182 = vmatprep.subr.mxu0 0.0
    %183 = vmatpush1.msra.mxu0 0.0
    %184 = vmatprep.subr.mxu0 0.0
    %185 = vmatpush1.msra.mxu0 0.0
    %186 = vmatprep.subr.mxu0 0.0
    %187 = vmatpush1.msra.mxu0 0.0
    %188 = vmatprep.subr.mxu0 0.0
    %189 = vmatpush1.msra.mxu0 0.0
    %190 = vmatprep.subr.mxu0 0.0
    %191 = vmatpush1.msra.mxu0 0.0
    %192 = vmatprep.subr.mxu0 0.0
    %193 = vmatpush1.msra.mxu0 0.0
    %194 = vmatprep.subr.mxu0 0.0
    %195 = vmatpush1.msra.mxu0 %v39
    %196 = vmatprep.subr.mxu0 0.0
    %197 = vmatpush1.msra.mxu0 %v38
    %198 = vmatprep.subr.mxu0 0.0
    %199 = vmatpush2.msra.mxu0 0.0
    %200 = vmatprep.subr.mxu0 0.0
    %201 = vmatpush2.msra.mxu0 0.0
    %202 = vmatprep.subr.mxu0 0.0
    %203 = vmatpush2.msra.mxu0 0.0
    %204 = vmatprep.subr.mxu0 0.0
    %205 = vmatpush2.msra.mxu0 0.0
    %206 = vmatprep.subr.mxu0 0.0
    %207 = vmatpush2.msra.mxu0 0.0
    %208 = vmatprep.subr.mxu0 0.0
    %209 = vmatpush2.msra.mxu0 0.0
    %210 = vmatprep.subr.mxu0 0.0
    %211 = vmatpush2.msra.mxu0 0.0
    %212 = vmatprep.subr.mxu0 0.0
    %213 = vmatpush2.msra.mxu0 0.0
    %214 = vmatprep.subr.mxu0 0.0
    %215 = vmatpush2.msra.mxu0 0.0
    %216 = vmatprep.subr.mxu0 0.0
    %217 = vmatpush2.msra.mxu0 0.0
    %218 = vmatprep.subr.mxu0 0.0
    %219 = vmatpush2.msra.mxu0 0.0
    %220 = vmatprep.subr.mxu0 0.0
    %221 = vmatpush2.msra.mxu0 0.0
    %222 = vmatprep.subr.mxu0 0.0
    %223 = vmatpush2.msra.mxu0 0.0
    %224 = vmatprep.subr.mxu0 0.0
    %225 = vmatpush2.msra.mxu0 0.0
    %226 = vmatprep.subr.mxu0 0.0
    %227 = vmatpush2.msra.mxu0 0.0
    %228 = vmatprep.subr.mxu0 0.0
    %229 = vmatpush2.msra.mxu0 0.0
    %230 = vmatprep.mubr.f32.mxu0 0.0
    %231 = vmatmul.mubr.f32.gmra.mxu0 %v152
    %v232 = vpop.f32.mrf.mxu0
    %v233 = vadd.f32 %v128, %v232
    %v234 = vpop.f32.mrf.mxu0
    %235 = vmatprep.mubr.f32.mxu0 0.0
    %236 = vmatmul.mubr.f32.gmra.mxu0 %v155
    %v237 = vpop.f32.mrf.mxu0
    %v238 = vadd.f32 %v133, %v237
    %v239 = vpop.f32.mrf.mxu0
    %240 = vmatprep.mubr.f32.mxu0 0.0
    %241 = vmatmul.mubr.f32.gmra.mxu0 %v158
    %v242 = vpop.f32.mrf.mxu0
    %v243 = vadd.f32 %v138, %v242
    %v244 = vpop.f32.mrf.mxu0
    %245 = vmatprep.mubr.f32.mxu0 0.0
    %246 = vmatmul.mubr.f32.gmra.mxu0 %v161
    %v247 = vpop.f32.mrf.mxu0
    %v248 = vadd.f32 %v143, %v247
    %v249 = vpop.f32.mrf.mxu0
    %250 = vmatprep.mubr.f32.mxu0 0.0
    %251 = vmatmul.mubr.f32.gmra.mxu0 %v164
    %v252 = vpop.f32.mrf.mxu0
    %v253 = vadd.f32 %v148, %v252
    %v254 = vpop.f32.mrf.mxu0
    %255 = vdwg.mxu0
    %v257 = vsel %vm45, %v37, 0
    %259 = vmatprep.subr.mxu0 0.0
    %260 = vmatpush1.msra.mxu0 0.0
    %261 = vmatprep.subr.mxu0 0.0
    %262 = vmatpush1.msra.mxu0 0.0
    %263 = vmatprep.subr.mxu0 0.0
    %264 = vmatpush1.msra.mxu0 0.0
    %265 = vmatprep.subr.mxu0 0.0
    %266 = vmatpush1.msra.mxu0 0.0
    %267 = vmatprep.subr.mxu0 0.0
    %268 = vmatpush1.msra.mxu0 0.0
    %269 = vmatprep.subr.mxu0 0.0
    %270 = vmatpush1.msra.mxu0 0.0
    %271 = vmatprep.subr.mxu0 0.0
    %272 = vmatpush1.msra.mxu0 0.0
    %273 = vmatprep.subr.mxu0 0.0
    %274 = vmatpush1.msra.mxu0 0.0
    %275 = vmatprep.subr.mxu0 0.0
    %276 = vmatpush1.msra.mxu0 0.0
    %277 = vmatprep.subr.mxu0 0.0
    %278 = vmatpush1.msra.mxu0 0.0
    %279 = vmatprep.subr.mxu0 0.0
    %280 = vmatpush1.msra.mxu0 0.0
    %281 = vmatprep.subr.mxu0 0.0
    %282 = vmatpush1.msra.mxu0 0.0
    %283 = vmatprep.subr.mxu0 0.0
    %284 = vmatpush1.msra.mxu0 0.0
    %285 = vmatprep.subr.mxu0 0.0
    %286 = vmatpush1.msra.mxu0 0.0
    %287 = vmatprep.subr.mxu0 0.0
    %288 = vmatpush1.msra.mxu0 %v43
    %289 = vmatprep.subr.mxu0 0.0
    %290 = vmatpush1.msra.mxu0 %v42
    %291 = vmatprep.subr.mxu0 0.0
    %292 = vmatpush2.msra.mxu0 0.0
    %293 = vmatprep.subr.mxu0 0.0
    %294 = vmatpush2.msra.mxu0 0.0
    %295 = vmatprep.subr.mxu0 0.0
    %296 = vmatpush2.msra.mxu0 0.0
    %297 = vmatprep.subr.mxu0 0.0
    %298 = vmatpush2.msra.mxu0 0.0
    %299 = vmatprep.subr.mxu0 0.0
    %300 = vmatpush2.msra.mxu0 0.0
    %301 = vmatprep.subr.mxu0 0.0
    %302 = vmatpush2.msra.mxu0 0.0
    %303 = vmatprep.subr.mxu0 0.0
    %304 = vmatpush2.msra.mxu0 0.0
    %305 = vmatprep.subr.mxu0 0.0
    %306 = vmatpush2.msra.mxu0 0.0
    %307 = vmatprep.subr.mxu0 0.0
    %308 = vmatpush2.msra.mxu0 0.0
    %309 = vmatprep.subr.mxu0 0.0
    %310 = vmatpush2.msra.mxu0 0.0
    %311 = vmatprep.subr.mxu0 0.0
    %312 = vmatpush2.msra.mxu0 0.0
    %313 = vmatprep.subr.mxu0 0.0
    %314 = vmatpush2.msra.mxu0 0.0
    %315 = vmatprep.subr.mxu0 0.0
    %316 = vmatpush2.msra.mxu0 0.0
    %317 = vmatprep.subr.mxu0 0.0
    %318 = vmatpush2.msra.mxu0 0.0
    %319 = vmatprep.subr.mxu0 0.0
    %320 = vmatpush2.msra.mxu0 0.0
    %321 = vmatprep.subr.mxu0 0.0
    %322 = vmatpush2.msra.mxu0 0.0
    %323 = vmatprep.mubr.f32.mxu0 0.0
    %324 = vmatmul.mubr.f32.gmra.mxu0 %v155
    %v325 = vpop.f32.mrf.mxu0
    %v326 = vadd.f32 0.0, %v325
    %v327 = vpop.f32.mrf.mxu0
    %328 = vmatprep.mubr.f32.mxu0 0.0
    %329 = vmatmul.mubr.f32.gmra.mxu0 %v158
    %v330 = vpop.f32.mrf.mxu0
    %v331 = vadd.f32 0.0, %v330
    %v332 = vpop.f32.mrf.mxu0
    %333 = vmatprep.mubr.f32.mxu0 0.0
    %334 = vmatmul.mubr.f32.gmra.mxu0 %v161
    %v335 = vpop.f32.mrf.mxu0
    %v336 = vadd.f32 0.0, %v335
    %v337 = vpop.f32.mrf.mxu0
    %338 = vmatprep.mubr.f32.mxu0 0.0
    %339 = vmatmul.mubr.f32.gmra.mxu0 %v164
    %v340 = vpop.f32.mrf.mxu0
    %v341 = vadd.f32 0.0, %v340
    %v342 = vpop.f32.mrf.mxu0
    %343 = vmatprep.mubr.f32.mxu0 0.0
    %344 = vmatmul.mubr.f32.gmra.mxu0 %v257
    %v345 = vpop.f32.mrf.mxu0
    %v346 = vadd.f32 0.0, %v345
    %v347 = vpop.f32.mrf.mxu0
    %348 = vdwg.mxu0
    %v349 = vadd.f32 %v233, %v326
    %v350 = vadd.f32 %v238, %v331
    %v351 = vadd.f32 %v243, %v336
    %v352 = vadd.f32 %v248, %v341
    %v353 = vadd.f32 %v253, %v346
    %v354 = vlaneseq
    %v355 = vshrl.u32 %v354, 7
    %v356 = vsub.s32 0, %v355
    %v357 = vrot.slane %v44, %v356
    %v358 = vadd.f32 %v349, %v357
    %v359 = vadd.f32 %v350, %v357
    %v360 = vadd.f32 %v351, %v357
    %v361 = vadd.f32 %v352, %v357
    %v362 = vadd.f32 %v353, %v357
    %vm363 = vcmask 261120
    %v365 = vsel %vm363, %v358, 0
    %v368 = vsel %vm363, %v359, 0
    %v371 = vsel %vm363, %v360, 0
    %v374 = vsel %vm363, %v361, 0
    %v377 = vsel %vm363, %v362, 0
    %379 = vmatprep.subr.mxu0 0.0
    %380 = vmatpush1.msra.mxu0 0.0
    %381 = vmatprep.subr.mxu0 0.0
    %382 = vmatpush1.msra.mxu0 0.0
    %383 = vmatprep.subr.mxu0 0.0
    %384 = vmatpush1.msra.mxu0 0.0
    %385 = vmatprep.subr.mxu0 0.0
    %386 = vmatpush1.msra.mxu0 0.0
    %387 = vmatprep.subr.mxu0 0.0
    %388 = vmatpush1.msra.mxu0 0.0
    %389 = vmatprep.subr.mxu0 0.0
    %390 = vmatpush1.msra.mxu0 0.0
    %391 = vmatprep.subr.mxu0 0.0
    %392 = vmatpush1.msra.mxu0 0.0
    %393 = vmatprep.subr.mxu0 0.0
    %394 = vmatpush1.msra.mxu0 0.0
    %395 = vmatprep.subr.mxu0 0.0
    %396 = vmatpush1.msra.mxu0 0.0
    %397 = vmatprep.subr.mxu0 0.0
    %398 = vmatpush1.msra.mxu0 0.0
    %399 = vmatprep.subr.mxu0 0.0
    %400 = vmatpush1.msra.mxu0 0.0
    %401 = vmatprep.subr.mxu0 0.0
    %402 = vmatpush1.msra.mxu0 0.0
    %403 = vmatprep.subr.mxu0 0.0
    %404 = vmatpush1.msra.mxu0 1.0
    %405 = vmatprep.subr.mxu0 0.0
    %406 = vmatpush1.msra.mxu0 1.0
    %407 = vmatprep.subr.mxu0 0.0
    %408 = vmatpush1.msra.mxu0 1.0
    %409 = vmatprep.subr.mxu0 0.0
    %410 = vmatpush1.msra.mxu0 1.0
    %411 = vmatprep.subr.mxu0 0.0
    %412 = vmatpush2.msra.mxu0 0.0
    %413 = vmatprep.subr.mxu0 0.0
    %414 = vmatpush2.msra.mxu0 0.0
    %415 = vmatprep.subr.mxu0 0.0
    %416 = vmatpush2.msra.mxu0 0.0
    %417 = vmatprep.subr.mxu0 0.0
    %418 = vmatpush2.msra.mxu0 0.0
    %419 = vmatprep.subr.mxu0 0.0
    %420 = vmatpush2.msra.mxu0 0.0
    %421 = vmatprep.subr.mxu0 0.0
    %422 = vmatpush2.msra.mxu0 0.0
    %423 = vmatprep.subr.mxu0 0.0
    %424 = vmatpush2.msra.mxu0 0.0
    %425 = vmatprep.subr.mxu0 0.0
    %426 = vmatpush2.msra.mxu0 0.0
    %427 = vmatprep.subr.mxu0 0.0
    %428 = vmatpush2.msra.mxu0 0.0
    %429 = vmatprep.subr.mxu0 0.0
    %430 = vmatpush2.msra.mxu0 0.0
    %431 = vmatprep.subr.mxu0 0.0
    %432 = vmatpush2.msra.mxu0 0.0
    %433 = vmatprep.subr.mxu0 0.0
    %434 = vmatpush2.msra.mxu0 0.0
    %435 = vmatprep.subr.mxu0 0.0
    %436 = vmatpush2.msra.mxu0 0.0
    %437 = vmatprep.subr.mxu0 0.0
    %438 = vmatpush2.msra.mxu0 0.0
    %439 = vmatprep.subr.mxu0 0.0
    %440 = vmatpush2.msra.mxu0 0.0
    %441 = vmatprep.subr.mxu0 0.0
    %442 = vmatpush2.msra.mxu0 0.0
    %443 = vmatprep.mubr.f32.mxu0 0.0
    %444 = vmatmul.mubr.f32.gmra.mxu0 %v365
    %v445 = vpop.f32.mrf.mxu0
    %v446 = vadd.f32 0.0, %v445
    %v447 = vpop.f32.mrf.mxu0
    %448 = vmatprep.mubr.f32.mxu0 0.0
    %449 = vmatmul.mubr.f32.gmra.mxu0 %v368
    %v450 = vpop.f32.mrf.mxu0
    %v451 = vadd.f32 0.0, %v450
    %v452 = vpop.f32.mrf.mxu0
    %453 = vmatprep.mubr.f32.mxu0 0.0
    %454 = vmatmul.mubr.f32.gmra.mxu0 %v371
    %v455 = vpop.f32.mrf.mxu0
    %v456 = vadd.f32 0.0, %v455
    %v457 = vpop.f32.mrf.mxu0
    %458 = vmatprep.mubr.f32.mxu0 0.0
    %459 = vmatmul.mubr.f32.gmra.mxu0 %v374
    %v460 = vpop.f32.mrf.mxu0
    %v461 = vadd.f32 0.0, %v460
    %v462 = vpop.f32.mrf.mxu0
    %463 = vmatprep.mubr.f32.mxu0 0.0
    %464 = vmatmul.mubr.f32.gmra.mxu0 %v377
    %v465 = vpop.f32.mrf.mxu0
    %v466 = vadd.f32 0.0, %v465
    %v467 = vpop.f32.mrf.mxu0
    %468 = vdwg.mxu0
    %vm469 = vcmask 7168
    %v470 = vsel %vm469, %v446, 0.0
    %v471 = vsel %vm469, %v451, 0.0
    %v472 = vadd.f32 %v470, %v471
    %v473 = vsel %vm469, %v456, 0.0
    %v474 = vadd.f32 %v472, %v473
    %v475 = vsel %vm469, %v461, 0.0
    %v476 = vadd.f32 %v474, %v475
    %v477 = vsel %vm469, %v466, 0.0
    %v478 = vadd.f32 %v476, %v477
    %v479 = vmul.f32 %v478, 0.00625
    %481 = vset.pattern.permute.xlu0 0
    %482 = vperm.xlu0 %481, %v479
    %v483 = vpop.permute.xlu0 %482
    %v485 = vsub.f32 %v358, %v483
    %v486 = vsub.f32 %v359, %v483
    %v487 = vsub.f32 %v360, %v483
    %v488 = vsub.f32 %v361, %v483
    %v489 = vsub.f32 %v362, %v483
    %v490 = vmul.f32 %v485, %v485
    %v491 = vmul.f32 %v486, %v486
    %v492 = vmul.f32 %v487, %v487
    %v493 = vmul.f32 %v488, %v488
    %v494 = vmul.f32 %v489, %v489
    %v496 = vsel %vm363, %v490, 0
    %v499 = vsel %vm363, %v491, 0
    %v502 = vsel %vm363, %v492, 0
    %v505 = vsel %vm363, %v493, 0
    %v508 = vsel %vm363, %v494, 0
    %510 = vmatprep.subr.mxu0 0.0
    %511 = vmatpush1.msra.mxu0 0.0
    %512 = vmatprep.subr.mxu0 0.0
    %513 = vmatpush1.msra.mxu0 0.0
    %514 = vmatprep.subr.mxu0 0.0
    %515 = vmatpush1.msra.mxu0 0.0
    %516 = vmatprep.subr.mxu0 0.0
    %517 = vmatpush1.msra.mxu0 0.0
    %518 = vmatprep.subr.mxu0 0.0
    %519 = vmatpush1.msra.mxu0 0.0
    %520 = vmatprep.subr.mxu0 0.0
    %521 = vmatpush1.msra.mxu0 0.0
    %522 = vmatprep.subr.mxu0 0.0
    %523 = vmatpush1.msra.mxu0 0.0
    %524 = vmatprep.subr.mxu0 0.0
    %525 = vmatpush1.msra.mxu0 0.0
    %526 = vmatprep.subr.mxu0 0.0
    %527 = vmatpush1.msra.mxu0 0.0
    %528 = vmatprep.subr.mxu0 0.0
    %529 = vmatpush1.msra.mxu0 0.0
    %530 = vmatprep.subr.mxu0 0.0
    %531 = vmatpush1.msra.mxu0 0.0
    %532 = vmatprep.subr.mxu0 0.0
    %533 = vmatpush1.msra.mxu0 0.0
    %534 = vmatprep.subr.mxu0 0.0
    %535 = vmatpush1.msra.mxu0 1.0
    %536 = vmatprep.subr.mxu0 0.0
    %537 = vmatpush1.msra.mxu0 1.0
    %538 = vmatprep.subr.mxu0 0.0
    %539 = vmatpush1.msra.mxu0 1.0
    %540 = vmatprep.subr.mxu0 0.0
    %541 = vmatpush1.msra.mxu0 1.0
    %542 = vmatprep.subr.mxu0 0.0
    %543 = vmatpush2.msra.mxu0 0.0
    %544 = vmatprep.subr.mxu0 0.0
    %545 = vmatpush2.msra.mxu0 0.0
    %546 = vmatprep.subr.mxu0 0.0
    %547 = vmatpush2.msra.mxu0 0.0
    %548 = vmatprep.subr.mxu0 0.0
    %549 = vmatpush2.msra.mxu0 0.0
    %550 = vmatprep.subr.mxu0 0.0
    %551 = vmatpush2.msra.mxu0 0.0
    %552 = vmatprep.subr.mxu0 0.0
    %553 = vmatpush2.msra.mxu0 0.0
    %554 = vmatprep.subr.mxu0 0.0
    %555 = vmatpush2.msra.mxu0 0.0
    %556 = vmatprep.subr.mxu0 0.0
    %557 = vmatpush2.msra.mxu0 0.0
    %558 = vmatprep.subr.mxu0 0.0
    %559 = vmatpush2.msra.mxu0 0.0
    %560 = vmatprep.subr.mxu0 0.0
    %561 = vmatpush2.msra.mxu0 0.0
    %562 = vmatprep.subr.mxu0 0.0
    %563 = vmatpush2.msra.mxu0 0.0
    %564 = vmatprep.subr.mxu0 0.0
    %565 = vmatpush2.msra.mxu0 0.0
    %566 = vmatprep.subr.mxu0 0.0
    %567 = vmatpush2.msra.mxu0 0.0
    %568 = vmatprep.subr.mxu0 0.0
    %569 = vmatpush2.msra.mxu0 0.0
    %570 = vmatprep.subr.mxu0 0.0
    %571 = vmatpush2.msra.mxu0 0.0
    %572 = vmatprep.subr.mxu0 0.0
    %573 = vmatpush2.msra.mxu0 0.0
    %574 = vmatprep.mubr.f32.mxu0 0.0
    %575 = vmatmul.mubr.f32.gmra.mxu0 %v496
    %v576 = vpop.f32.mrf.mxu0
    %v577 = vadd.f32 0.0, %v576
    %v578 = vpop.f32.mrf.mxu0
    %579 = vmatprep.mubr.f32.mxu0 0.0
    %580 = vmatmul.mubr.f32.gmra.mxu0 %v499
    %v581 = vpop.f32.mrf.mxu0
    %v582 = vadd.f32 0.0, %v581
    %v583 = vpop.f32.mrf.mxu0
    %584 = vmatprep.mubr.f32.mxu0 0.0
    %585 = vmatmul.mubr.f32.gmra.mxu0 %v502
    %v586 = vpop.f32.mrf.mxu0
    %v587 = vadd.f32 0.0, %v586
    %v588 = vpop.f32.mrf.mxu0
    %589 = vmatprep.mubr.f32.mxu0 0.0
    %590 = vmatmul.mubr.f32.gmra.mxu0 %v505
    %v591 = vpop.f32.mrf.mxu0
    %v592 = vadd.f32 0.0, %v591
    %v593 = vpop.f32.mrf.mxu0
    %594 = vmatprep.mubr.f32.mxu0 0.0
    %595 = vmatmul.mubr.f32.gmra.mxu0 %v508
    %v596 = vpop.f32.mrf.mxu0
    %v597 = vadd.f32 0.0, %v596
    %v598 = vpop.f32.mrf.mxu0
    %599 = vdwg.mxu0
    %v600 = vsel %vm469, %v577, 0.0
    %v601 = vsel %vm469, %v582, 0.0
    %v602 = vadd.f32 %v600, %v601
    %v603 = vsel %vm469, %v587, 0.0
    %v604 = vadd.f32 %v602, %v603
    %v605 = vsel %vm469, %v592, 0.0
    %v606 = vadd.f32 %v604, %v605
    %v607 = vsel %vm469, %v597, 0.0
    %v608 = vadd.f32 %v606, %v607
    %v609 = vmul.f32 %v608, 0.00625
    %v610 = vadd.f32 %v609, 1e-05
    %v611 = vrsqrt.pop %v610
    %613 = vset.pattern.permute.xlu0 0
    %614 = vperm.xlu0 %613, %v611
    %v615 = vpop.permute.xlu0 %614
    %v617 = vmul.f32 %v485, %v615
    %v618 = vmul.f32 %v486, %v615
    %v619 = vmul.f32 %v487, %v615
    %v620 = vmul.f32 %v488, %v615
    %v621 = vmul.f32 %v489, %v615
    %v622 = vlaneseq
    %v623 = vshrl.u32 %v622, 7
    %v624 = vsub.s32 1, %v623
    %v625 = vrot.slane %v44, %v624
    %v626 = vmul.f32 %v617, %v625
    %v627 = vmul.f32 %v618, %v625
    %v628 = vmul.f32 %v619, %v625
    %v629 = vmul.f32 %v620, %v625
    %v630 = vmul.f32 %v621, %v625
    %v631 = vlaneseq
    %v632 = vshrl.u32 %v631, 7
    %v633 = vsub.s32 2, %v632
    %v634 = vrot.slane %v44, %v633
    %v635 = vadd.f32 %v626, %v634
    %v636 = vadd.f32 %v627, %v634
    %v637 = vadd.f32 %v628, %v634
    %v638 = vadd.f32 %v629, %v634
    %v639 = vadd.f32 %v630, %v634
    %v640 = vmin.f32 %v635, 20.0
    %v641 = vmin.f32 %v636, 20.0
    %v642 = vmin.f32 %v637, 20.0
    %v643 = vmin.f32 %v638, 20.0
    %v644 = vmin.f32 %v639, 20.0
    %v645 = vmul.f32 %v640, 1.442695
    %v646 = vpow.pop %v645
    %v647 = vmul.f32 %v641, 1.442695
    %v648 = vpow.pop %v647
    %v649 = vmul.f32 %v642, 1.442695
    %v650 = vpow.pop %v649
    %v651 = vmul.f32 %v643, 1.442695
    %v652 = vpow.pop %v651
    %v653 = vmul.f32 %v644, 1.442695
    %v654 = vpow.pop %v653
    %v655 = vadd.f32 %v646, 2.0
    %v656 = vadd.f32 %v648, 2.0
    %v657 = vadd.f32 %v650, 2.0
    %v658 = vadd.f32 %v652, 2.0
    %v659 = vadd.f32 %v654, 2.0
    %v660 = vmul.f32 %v646, %v655
    %v661 = vmul.f32 %v648, %v656
    %v662 = vmul.f32 %v650, %v657
    %v663 = vmul.f32 %v652, %v658
    %v664 = vmul.f32 %v654, %v659
    %v665 = vadd.f32 %v660, 2.0
    %v666 = vadd.f32 %v661, 2.0
    %v667 = vadd.f32 %v662, 2.0
    %v668 = vadd.f32 %v663, 2.0
    %v669 = vadd.f32 %v664, 2.0
    %v670 = vrcp.pop %v665
    %v671 = vmul.f32 %v660, %v670
    %v672 = vrcp.pop %v666
    %v673 = vmul.f32 %v661, %v672
    %v674 = vrcp.pop %v667
    %v675 = vmul.f32 %v662, %v674
    %v676 = vrcp.pop %v668
    %v677 = vmul.f32 %v663, %v676
    %v678 = vrcp.pop %v669
    %v679 = vmul.f32 %v664, %v678
    %v680 = vmul.f32 %v635, %v671
    %v681 = vmul.f32 %v636, %v673
    %v682 = vmul.f32 %v637, %v675
    %v683 = vmul.f32 %v638, %v677
    %v684 = vmul.f32 %v639, %v679
    %v685 = vld [vmem:[%s4] sm:$0xff]
    %v686 = vld [vmem:[%s4 + $0x8] sm:$0xff]
    %v687 = vld [vmem:[%s4 + $0x10] sm:$0xff]
    %v688 = vld [vmem:[%s4 + $0x18] sm:$0xff]
    %v689 = vld [vmem:[%s4 + $0x20] sm:$0xff]
    %v690 = vld [vmem:[%s4 + $0x28] sm:$0xff]
    %v691 = vld [vmem:[%s4 + $0x30] sm:$0xff]
    %v692 = vld [vmem:[%s4 + $0x38] sm:$0xff]
    %v693 = vld [vmem:[%s4 + $0x40] sm:$0xff]
    %v694 = vld [vmem:[%s4 + $0x48] sm:$0xff]
    %v695 = vld [vmem:[%s4 + $0x50] sm:$0xff]
    %v696 = vld [vmem:[%s4 + $0x58] sm:$0xff]
    %v697 = vld [vmem:[%s4 + $0x60] sm:$0x7]
    %v699 = vsel %vm363, %v680, 0
    %v702 = vsel %vm363, %v682, 0
    %v705 = vsel %vm363, %v684, 0
    %707 = vmatprep.subr.mxu0 0.0
    %708 = vmatpush1.msra.mxu0 0.0
    %709 = vmatprep.subr.mxu0 0.0
    %710 = vmatpush1.msra.mxu0 0.0
    %711 = vmatprep.subr.mxu0 0.0
    %712 = vmatpush1.msra.mxu0 0.0
    %713 = vmatprep.subr.mxu0 0.0
    %714 = vmatpush1.msra.mxu0 0.0
    %715 = vmatprep.subr.mxu0 0.0
    %716 = vmatpush1.msra.mxu0 0.0
    %717 = vmatprep.subr.mxu0 0.0
    %718 = vmatpush1.msra.mxu0 0.0
    %719 = vmatprep.subr.mxu0 0.0
    %720 = vmatpush1.msra.mxu0 0.0
    %721 = vmatprep.subr.mxu0 0.0
    %722 = vmatpush1.msra.mxu0 0.0
    %723 = vmatprep.subr.mxu0 0.0
    %724 = vmatpush1.msra.mxu0 0.0
    %725 = vmatprep.subr.mxu0 0.0
    %726 = vmatpush1.msra.mxu0 0.0
    %727 = vmatprep.subr.mxu0 0.0
    %728 = vmatpush1.msra.mxu0 0.0
    %729 = vmatprep.subr.mxu0 0.0
    %730 = vmatpush1.msra.mxu0 0.0
    %731 = vmatprep.subr.mxu0 0.0
    %732 = vmatpush1.msra.mxu0 %v692
    %733 = vmatprep.subr.mxu0 0.0
    %734 = vmatpush1.msra.mxu0 %v691
    %735 = vmatprep.subr.mxu0 0.0
    %736 = vmatpush1.msra.mxu0 %v690
    %737 = vmatprep.subr.mxu0 0.0
    %738 = vmatpush1.msra.mxu0 %v689
    %739 = vmatprep.subr.mxu0 0.0
    %740 = vmatpush2.msra.mxu0 0.0
    %741 = vmatprep.subr.mxu0 0.0
    %742 = vmatpush2.msra.mxu0 0.0
    %743 = vmatprep.subr.mxu0 0.0
    %744 = vmatpush2.msra.mxu0 0.0
    %745 = vmatprep.subr.mxu0 0.0
    %746 = vmatpush2.msra.mxu0 0.0
    %747 = vmatprep.subr.mxu0 0.0
    %748 = vmatpush2.msra.mxu0 0.0
    %749 = vmatprep.subr.mxu0 0.0
    %750 = vmatpush2.msra.mxu0 0.0
    %751 = vmatprep.subr.mxu0 0.0
    %752 = vmatpush2.msra.mxu0 0.0
    %753 = vmatprep.subr.mxu0 0.0
    %754 = vmatpush2.msra.mxu0 0.0
    %755 = vmatprep.subr.mxu0 0.0
    %756 = vmatpush2.msra.mxu0 0.0
    %757 = vmatprep.subr.mxu0 0.0
    %758 = vmatpush2.msra.mxu0 0.0
    %759 = vmatprep.subr.mxu0 0.0
    %760 = vmatpush2.msra.mxu0 0.0
    %761 = vmatprep.subr.mxu0 0.0
    %762 = vmatpush2.msra.mxu0 0.0
    %763 = vmatprep.subr.mxu0 0.0
    %764 = vmatpush2.msra.mxu0 0.0
    %765 = vmatprep.subr.mxu0 0.0
    %766 = vmatpush2.msra.mxu0 0.0
    %767 = vmatprep.subr.mxu0 0.0
    %768 = vmatpush2.msra.mxu0 0.0
    %769 = vmatprep.subr.mxu0 0.0
    %770 = vmatpush2.msra.mxu0 0.0
    %771 = vmatprep.mubr.f32.mxu0 0.0
    %772 = vmatmul.mubr.f32.gmra.mxu0 %v699
    %v773 = vpop.f32.mrf.mxu0
    %v774 = vadd.f32 0.0, %v773
    %v775 = vpop.f32.mrf.mxu0
    %776 = vmatprep.mubr.f32.mxu0 0.0
    %777 = vmatmul.mubr.f32.gmra.mxu0 %v702
    %v778 = vpop.f32.mrf.mxu0
    %v779 = vadd.f32 0.0, %v778
    %v780 = vpop.f32.mrf.mxu0
    %781 = vmatprep.mubr.f32.mxu0 0.0
    %782 = vmatmul.mubr.f32.gmra.mxu0 %v705
    %v783 = vpop.f32.mrf.mxu0
    %v784 = vadd.f32 0.0, %v783
    %v785 = vpop.f32.mrf.mxu0
    %786 = vdwg.mxu0
    %v788 = vsel %vm363, 0.0, 0
    %v791 = vsel %vm363, %v681, 0
    %v794 = vsel %vm363, %v683, 0
    %796 = vmatprep.subr.mxu0 0.0
    %797 = vmatpush1.msra.mxu0 0.0
    %798 = vmatprep.subr.mxu0 0.0
    %799 = vmatpush1.msra.mxu0 0.0
    %800 = vmatprep.subr.mxu0 0.0
    %801 = vmatpush1.msra.mxu0 0.0
    %802 = vmatprep.subr.mxu0 0.0
    %803 = vmatpush1.msra.mxu0 0.0
    %804 = vmatprep.subr.mxu0 0.0
    %805 = vmatpush1.msra.mxu0 0.0
    %806 = vmatprep.subr.mxu0 0.0
    %807 = vmatpush1.msra.mxu0 0.0
    %808 = vmatprep.subr.mxu0 0.0
    %809 = vmatpush1.msra.mxu0 0.0
    %810 = vmatprep.subr.mxu0 0.0
    %811 = vmatpush1.msra.mxu0 0.0
    %812 = vmatprep.subr.mxu0 0.0
    %813 = vmatpush1.msra.mxu0 0.0
    %814 = vmatprep.subr.mxu0 0.0
    %815 = vmatpush1.msra.mxu0 0.0
    %816 = vmatprep.subr.mxu0 0.0
    %817 = vmatpush1.msra.mxu0 0.0
    %818 = vmatprep.subr.mxu0 0.0
    %819 = vmatpush1.msra.mxu0 0.0
    %820 = vmatprep.subr.mxu0 0.0
    %821 = vmatpush1.msra.mxu0 %v688
    %822 = vmatprep.subr.mxu0 0.0
    %823 = vmatpush1.msra.mxu0 %v687
    %824 = vmatprep.subr.mxu0 0.0
    %825 = vmatpush1.msra.mxu0 %v686
    %826 = vmatprep.subr.mxu0 0.0
    %827 = vmatpush1.msra.mxu0 %v685
    %828 = vmatprep.subr.mxu0 0.0
    %829 = vmatpush2.msra.mxu0 0.0
    %830 = vmatprep.subr.mxu0 0.0
    %831 = vmatpush2.msra.mxu0 0.0
    %832 = vmatprep.subr.mxu0 0.0
    %833 = vmatpush2.msra.mxu0 0.0
    %834 = vmatprep.subr.mxu0 0.0
    %835 = vmatpush2.msra.mxu0 0.0
    %836 = vmatprep.subr.mxu0 0.0
    %837 = vmatpush2.msra.mxu0 0.0
    %838 = vmatprep.subr.mxu0 0.0
    %839 = vmatpush2.msra.mxu0 0.0
    %840 = vmatprep.subr.mxu0 0.0
    %841 = vmatpush2.msra.mxu0 0.0
    %842 = vmatprep.subr.mxu0 0.0
    %843 = vmatpush2.msra.mxu0 0.0
    %844 = vmatprep.subr.mxu0 0.0
    %845 = vmatpush2.msra.mxu0 0.0
    %846 = vmatprep.subr.mxu0 0.0
    %847 = vmatpush2.msra.mxu0 0.0
    %848 = vmatprep.subr.mxu0 0.0
    %849 = vmatpush2.msra.mxu0 0.0
    %850 = vmatprep.subr.mxu0 0.0
    %851 = vmatpush2.msra.mxu0 0.0
    %852 = vmatprep.subr.mxu0 0.0
    %853 = vmatpush2.msra.mxu0 0.0
    %854 = vmatprep.subr.mxu0 0.0
    %855 = vmatpush2.msra.mxu0 0.0
    %856 = vmatprep.subr.mxu0 0.0
    %857 = vmatpush2.msra.mxu0 0.0
    %858 = vmatprep.subr.mxu0 0.0
    %859 = vmatpush2.msra.mxu0 0.0
    %860 = vmatprep.mubr.f32.mxu0 0.0
    %861 = vmatmul.mubr.f32.gmra.mxu0 %v788
    %v862 = vpop.f32.mrf.mxu0
    %v863 = vadd.f32 %v774, %v862
    %v864 = vpop.f32.mrf.mxu0
    %865 = vmatprep.mubr.f32.mxu0 0.0
    %866 = vmatmul.mubr.f32.gmra.mxu0 %v791
    %v867 = vpop.f32.mrf.mxu0
    %v868 = vadd.f32 %v779, %v867
    %v869 = vpop.f32.mrf.mxu0
    %870 = vmatprep.mubr.f32.mxu0 0.0
    %871 = vmatmul.mubr.f32.gmra.mxu0 %v794
    %v872 = vpop.f32.mrf.mxu0
    %v873 = vadd.f32 %v784, %v872
    %v874 = vpop.f32.mrf.mxu0
    %875 = vdwg.mxu0
    %876 = vmatprep.subr.mxu0 0.0
    %877 = vmatpush1.msra.mxu0 0.0
    %878 = vmatprep.subr.mxu0 0.0
    %879 = vmatpush1.msra.mxu0 0.0
    %880 = vmatprep.subr.mxu0 0.0
    %881 = vmatpush1.msra.mxu0 0.0
    %882 = vmatprep.subr.mxu0 0.0
    %883 = vmatpush1.msra.mxu0 0.0
    %884 = vmatprep.subr.mxu0 0.0
    %885 = vmatpush1.msra.mxu0 0.0
    %886 = vmatprep.subr.mxu0 0.0
    %887 = vmatpush1.msra.mxu0 0.0
    %888 = vmatprep.subr.mxu0 0.0
    %889 = vmatpush1.msra.mxu0 0.0
    %890 = vmatprep.subr.mxu0 0.0
    %891 = vmatpush1.msra.mxu0 0.0
    %892 = vmatprep.subr.mxu0 0.0
    %893 = vmatpush1.msra.mxu0 0.0
    %894 = vmatprep.subr.mxu0 0.0
    %895 = vmatpush1.msra.mxu0 0.0
    %896 = vmatprep.subr.mxu0 0.0
    %897 = vmatpush1.msra.mxu0 0.0
    %898 = vmatprep.subr.mxu0 0.0
    %899 = vmatpush1.msra.mxu0 0.0
    %900 = vmatprep.subr.mxu0 0.0
    %901 = vmatpush1.msra.mxu0 %v696
    %902 = vmatprep.subr.mxu0 0.0
    %903 = vmatpush1.msra.mxu0 %v695
    %904 = vmatprep.subr.mxu0 0.0
    %905 = vmatpush1.msra.mxu0 %v694
    %906 = vmatprep.subr.mxu0 0.0
    %907 = vmatpush1.msra.mxu0 %v693
    %908 = vmatprep.subr.mxu0 0.0
    %909 = vmatpush2.msra.mxu0 0.0
    %910 = vmatprep.subr.mxu0 0.0
    %911 = vmatpush2.msra.mxu0 0.0
    %912 = vmatprep.subr.mxu0 0.0
    %913 = vmatpush2.msra.mxu0 0.0
    %914 = vmatprep.subr.mxu0 0.0
    %915 = vmatpush2.msra.mxu0 0.0
    %916 = vmatprep.subr.mxu0 0.0
    %917 = vmatpush2.msra.mxu0 0.0
    %918 = vmatprep.subr.mxu0 0.0
    %919 = vmatpush2.msra.mxu0 0.0
    %920 = vmatprep.subr.mxu0 0.0
    %921 = vmatpush2.msra.mxu0 0.0
    %922 = vmatprep.subr.mxu0 0.0
    %923 = vmatpush2.msra.mxu0 0.0
    %924 = vmatprep.subr.mxu0 0.0
    %925 = vmatpush2.msra.mxu0 0.0
    %926 = vmatprep.subr.mxu0 0.0
    %927 = vmatpush2.msra.mxu0 0.0
    %928 = vmatprep.subr.mxu0 0.0
    %929 = vmatpush2.msra.mxu0 0.0
    %930 = vmatprep.subr.mxu0 0.0
    %931 = vmatpush2.msra.mxu0 0.0
    %932 = vmatprep.subr.mxu0 0.0
    %933 = vmatpush2.msra.mxu0 0.0
    %934 = vmatprep.subr.mxu0 0.0
    %935 = vmatpush2.msra.mxu0 0.0
    %936 = vmatprep.subr.mxu0 0.0
    %937 = vmatpush2.msra.mxu0 0.0
    %938 = vmatprep.subr.mxu0 0.0
    %939 = vmatpush2.msra.mxu0 0.0
    %940 = vmatprep.mubr.f32.mxu0 0.0
    %941 = vmatmul.mubr.f32.gmra.mxu0 %v791
    %v942 = vpop.f32.mrf.mxu0
    %v943 = vadd.f32 0.0, %v942
    %v944 = vpop.f32.mrf.mxu0
    %945 = vmatprep.mubr.f32.mxu0 0.0
    %946 = vmatmul.mubr.f32.gmra.mxu0 %v794
    %v947 = vpop.f32.mrf.mxu0
    %v948 = vadd.f32 0.0, %v947
    %v949 = vpop.f32.mrf.mxu0
    %950 = vmatprep.mubr.f32.mxu0 0.0
    %951 = vmatmul.mubr.f32.gmra.mxu0 %v788
    %v952 = vpop.f32.mrf.mxu0
    %v953 = vadd.f32 0.0, %v952
    %v954 = vpop.f32.mrf.mxu0
    %955 = vdwg.mxu0
    %v956 = vadd.f32 %v863, %v943
    %v957 = vadd.f32 %v868, %v948
    %v958 = vadd.f32 %v873, %v953
    %v959 = vlaneseq
    %v960 = vshrl.u32 %v959, 7
    %v961 = vsub.s32 0, %v960
    %v962 = vrot.slane %v697, %v961
    %v963 = vadd.f32 %v956, %v962
    %v964 = vadd.f32 %v957, %v962
    %v965 = vadd.f32 %v958, %v962
    %vm966 = vcmask 523264
    %v968 = vsel %vm966, %v963, 0
    %v971 = vsel %vm966, %v964, 0
    %v974 = vsel %vm966, %v965, 0
    %976 = vmatprep.subr.mxu0 0.0
    %977 = vmatpush1.msra.mxu0 0.0
    %978 = vmatprep.subr.mxu0 0.0
    %979 = vmatpush1.msra.mxu0 0.0
    %980 = vmatprep.subr.mxu0 0.0
    %981 = vmatpush1.msra.mxu0 0.0
    %982 = vmatprep.subr.mxu0 0.0
    %983 = vmatpush1.msra.mxu0 0.0
    %984 = vmatprep.subr.mxu0 0.0
    %985 = vmatpush1.msra.mxu0 0.0
    %986 = vmatprep.subr.mxu0 0.0
    %987 = vmatpush1.msra.mxu0 0.0
    %988 = vmatprep.subr.mxu0 0.0
    %989 = vmatpush1.msra.mxu0 0.0
    %990 = vmatprep.subr.mxu0 0.0
    %991 = vmatpush1.msra.mxu0 0.0
    %992 = vmatprep.subr.mxu0 0.0
    %993 = vmatpush1.msra.mxu0 1.0
    %994 = vmatprep.subr.mxu0 0.0
    %995 = vmatpush1.msra.mxu0 1.0
    %996 = vmatprep.subr.mxu0 0.0
    %997 = vmatpush1.msra.mxu0 1.0
    %998 = vmatprep.subr.mxu0 0.0
    %999 = vmatpush1.msra.mxu0 1.0
    %1000 = vmatprep.subr.mxu0 0.0
    %1001 = vmatpush1.msra.mxu0 1.0
    %1002 = vmatprep.subr.mxu0 0.0
    %1003 = vmatpush1.msra.mxu0 1.0
    %1004 = vmatprep.subr.mxu0 0.0
    %1005 = vmatpush1.msra.mxu0 1.0
    %1006 = vmatprep.subr.mxu0 0.0
    %1007 = vmatpush1.msra.mxu0 1.0
    %1008 = vmatprep.subr.mxu0 0.0
    %1009 = vmatpush2.msra.mxu0 0.0
    %1010 = vmatprep.subr.mxu0 0.0
    %1011 = vmatpush2.msra.mxu0 0.0
    %1012 = vmatprep.subr.mxu0 0.0
    %1013 = vmatpush2.msra.mxu0 0.0
    %1014 = vmatprep.subr.mxu0 0.0
    %1015 = vmatpush2.msra.mxu0 0.0
    %1016 = vmatprep.subr.mxu0 0.0
    %1017 = vmatpush2.msra.mxu0 0.0
    %1018 = vmatprep.subr.mxu0 0.0
    %1019 = vmatpush2.msra.mxu0 0.0
    %1020 = vmatprep.subr.mxu0 0.0
    %1021 = vmatpush2.msra.mxu0 0.0
    %1022 = vmatprep.subr.mxu0 0.0
    %1023 = vmatpush2.msra.mxu0 0.0
    %1024 = vmatprep.subr.mxu0 0.0
    %1025 = vmatpush2.msra.mxu0 0.0
    %1026 = vmatprep.subr.mxu0 0.0
    %1027 = vmatpush2.msra.mxu0 0.0
    %1028 = vmatprep.subr.mxu0 0.0
    %1029 = vmatpush2.msra.mxu0 0.0
    %1030 = vmatprep.subr.mxu0 0.0
    %1031 = vmatpush2.msra.mxu0 0.0
    %1032 = vmatprep.subr.mxu0 0.0
    %1033 = vmatpush2.msra.mxu0 0.0
    %1034 = vmatprep.subr.mxu0 0.0
    %1035 = vmatpush2.msra.mxu0 0.0
    %1036 = vmatprep.subr.mxu0 0.0
    %1037 = vmatpush2.msra.mxu0 0.0
    %1038 = vmatprep.subr.mxu0 0.0
    %1039 = vmatpush2.msra.mxu0 0.0
    %1040 = vmatprep.mubr.f32.mxu0 0.0
    %1041 = vmatmul.mubr.f32.gmra.mxu0 %v968
    %v1042 = vpop.f32.mrf.mxu0
    %v1043 = vadd.f32 0.0, %v1042
    %v1044 = vpop.f32.mrf.mxu0
    %1045 = vmatprep.mubr.f32.mxu0 0.0
    %1046 = vmatmul.mubr.f32.gmra.mxu0 %v971
    %v1047 = vpop.f32.mrf.mxu0
    %v1048 = vadd.f32 0.0, %v1047
    %v1049 = vpop.f32.mrf.mxu0
    %1050 = vmatprep.mubr.f32.mxu0 0.0
    %1051 = vmatmul.mubr.f32.gmra.mxu0 %v974
    %v1052 = vpop.f32.mrf.mxu0
    %v1053 = vadd.f32 0.0, %v1052
    %v1054 = vpop.f32.mrf.mxu0
    %1055 = vdwg.mxu0
    %v1056 = vsel %vm469, %v1043, 0.0
    %v1057 = vsel %vm469, %v1048, 0.0
    %v1058 = vadd.f32 %v1056, %v1057
    %v1059 = vsel %vm469, %v1053, 0.0
    %v1060 = vadd.f32 %v1058, %v1059
    %v1061 = vmul.f32 %v1060, 0.0052083335
    %1063 = vset.pattern.permute.xlu0 0
    %1064 = vperm.xlu0 %1063, %v1061
    %v1065 = vpop.permute.xlu0 %1064
    %v1067 = vsub.f32 %v963, %v1065
    %v1068 = vsub.f32 %v964, %v1065
    %v1069 = vsub.f32 %v965, %v1065
    %v1070 = vmul.f32 %v1067, %v1067
    %v1071 = vmul.f32 %v1068, %v1068
    %v1072 = vmul.f32 %v1069, %v1069
    %v1074 = vsel %vm966, %v1070, 0
    %v1077 = vsel %vm966, %v1071, 0
    %v1080 = vsel %vm966, %v1072, 0
    %1082 = vmatprep.subr.mxu0 0.0
    %1083 = vmatpush1.msra.mxu0 0.0
    %1084 = vmatprep.subr.mxu0 0.0
    %1085 = vmatpush1.msra.mxu0 0.0
    %1086 = vmatprep.subr.mxu0 0.0
    %1087 = vmatpush1.msra.mxu0 0.0
    %1088 = vmatprep.subr.mxu0 0.0
    %1089 = vmatpush1.msra.mxu0 0.0
    %1090 = vmatprep.subr.mxu0 0.0
    %1091 = vmatpush1.msra.mxu0 0.0
    %1092 = vmatprep.subr.mxu0 0.0
    %1093 = vmatpush1.msra.mxu0 0.0
    %1094 = vmatprep.subr.mxu0 0.0
    %1095 = vmatpush1.msra.mxu0 0.0
    %1096 = vmatprep.subr.mxu0 0.0
    %1097 = vmatpush1.msra.mxu0 0.0
    %1098 = vmatprep.subr.mxu0 0.0
    %1099 = vmatpush1.msra.mxu0 1.0
    %1100 = vmatprep.subr.mxu0 0.0
    %1101 = vmatpush1.msra.mxu0 1.0
    %1102 = vmatprep.subr.mxu0 0.0
    %1103 = vmatpush1.msra.mxu0 1.0
    %1104 = vmatprep.subr.mxu0 0.0
    %1105 = vmatpush1.msra.mxu0 1.0
    %1106 = vmatprep.subr.mxu0 0.0
    %1107 = vmatpush1.msra.mxu0 1.0
    %1108 = vmatprep.subr.mxu0 0.0
    %1109 = vmatpush1.msra.mxu0 1.0
    %1110 = vmatprep.subr.mxu0 0.0
    %1111 = vmatpush1.msra.mxu0 1.0
    %1112 = vmatprep.subr.mxu0 0.0
    %1113 = vmatpush1.msra.mxu0 1.0
    %1114 = vmatprep.subr.mxu0 0.0
    %1115 = vmatpush2.msra.mxu0 0.0
    %1116 = vmatprep.subr.mxu0 0.0
    %1117 = vmatpush2.msra.mxu0 0.0
    %1118 = vmatprep.subr.mxu0 0.0
    %1119 = vmatpush2.msra.mxu0 0.0
    %1120 = vmatprep.subr.mxu0 0.0
    %1121 = vmatpush2.msra.mxu0 0.0
    %1122 = vmatprep.subr.mxu0 0.0
    %1123 = vmatpush2.msra.mxu0 0.0
    %1124 = vmatprep.subr.mxu0 0.0
    %1125 = vmatpush2.msra.mxu0 0.0
    %1126 = vmatprep.subr.mxu0 0.0
    %1127 = vmatpush2.msra.mxu0 0.0
    %1128 = vmatprep.subr.mxu0 0.0
    %1129 = vmatpush2.msra.mxu0 0.0
    %1130 = vmatprep.subr.mxu0 0.0
    %1131 = vmatpush2.msra.mxu0 0.0
    %1132 = vmatprep.subr.mxu0 0.0
    %1133 = vmatpush2.msra.mxu0 0.0
    %1134 = vmatprep.subr.mxu0 0.0
    %1135 = vmatpush2.msra.mxu0 0.0
    %1136 = vmatprep.subr.mxu0 0.0
    %1137 = vmatpush2.msra.mxu0 0.0
    %1138 = vmatprep.subr.mxu0 0.0
    %1139 = vmatpush2.msra.mxu0 0.0
    %1140 = vmatprep.subr.mxu0 0.0
    %1141 = vmatpush2.msra.mxu0 0.0
    %1142 = vmatprep.subr.mxu0 0.0
    %1143 = vmatpush2.msra.mxu0 0.0
    %1144 = vmatprep.subr.mxu0 0.0
    %1145 = vmatpush2.msra.mxu0 0.0
    %1146 = vmatprep.mubr.f32.mxu0 0.0
    %1147 = vmatmul.mubr.f32.gmra.mxu0 %v1074
    %v1148 = vpop.f32.mrf.mxu0
    %v1149 = vadd.f32 0.0, %v1148
    %v1150 = vpop.f32.mrf.mxu0
    %1151 = vmatprep.mubr.f32.mxu0 0.0
    %1152 = vmatmul.mubr.f32.gmra.mxu0 %v1077
    %v1153 = vpop.f32.mrf.mxu0
    %v1154 = vadd.f32 0.0, %v1153
    %v1155 = vpop.f32.mrf.mxu0
    %1156 = vmatprep.mubr.f32.mxu0 0.0
    %1157 = vmatmul.mubr.f32.gmra.mxu0 %v1080
    %v1158 = vpop.f32.mrf.mxu0
    %v1159 = vadd.f32 0.0, %v1158
    %v1160 = vpop.f32.mrf.mxu0
    %1161 = vdwg.mxu0
    %v1162 = vsel %vm469, %v1149, 0.0
    %v1163 = vsel %vm469, %v1154, 0.0
    %v1164 = vadd.f32 %v1162, %v1163
    %v1165 = vsel %vm469, %v1159, 0.0
    %v1166 = vadd.f32 %v1164, %v1165
    %v1167 = vmul.f32 %v1166, 0.0052083335
    %v1168 = vadd.f32 %v1167, 1e-05
    %v1169 = vrsqrt.pop %v1168
    %1171 = vset.pattern.permute.xlu0 0
    %1172 = vperm.xlu0 %1171, %v1169
    %v1173 = vpop.permute.xlu0 %1172
    %v1175 = vmul.f32 %v1067, %v1173
    %v1176 = vmul.f32 %v1068, %v1173
    %v1177 = vmul.f32 %v1069, %v1173
    %v1178 = vlaneseq
    %v1179 = vshrl.u32 %v1178, 7
    %v1180 = vsub.s32 1, %v1179
    %v1181 = vrot.slane %v697, %v1180
    %v1182 = vmul.f32 %v1175, %v1181
    %v1183 = vmul.f32 %v1176, %v1181
    %v1184 = vmul.f32 %v1177, %v1181
    %v1185 = vlaneseq
    %v1186 = vshrl.u32 %v1185, 7
    %v1187 = vsub.s32 2, %v1186
    %v1188 = vrot.slane %v697, %v1187
    %v1189 = vadd.f32 %v1182, %v1188
    %v1190 = vadd.f32 %v1183, %v1188
    %v1191 = vadd.f32 %v1184, %v1188
    %v1192 = vmin.f32 %v1189, 20.0
    %v1193 = vmin.f32 %v1190, 20.0
    %v1194 = vmin.f32 %v1191, 20.0
    %v1195 = vmul.f32 %v1192, 1.442695
    %v1196 = vpow.pop %v1195
    %v1197 = vmul.f32 %v1193, 1.442695
    %v1198 = vpow.pop %v1197
    %v1199 = vmul.f32 %v1194, 1.442695
    %v1200 = vpow.pop %v1199
    %v1201 = vadd.f32 %v1196, 2.0
    %v1202 = vadd.f32 %v1198, 2.0
    %v1203 = vadd.f32 %v1200, 2.0
    %v1204 = vmul.f32 %v1196, %v1201
    %v1205 = vmul.f32 %v1198, %v1202
    %v1206 = vmul.f32 %v1200, %v1203
    %v1207 = vadd.f32 %v1204, 2.0
    %v1208 = vadd.f32 %v1205, 2.0
    %v1209 = vadd.f32 %v1206, 2.0
    %v1210 = vrcp.pop %v1207
    %v1211 = vmul.f32 %v1204, %v1210
    %v1212 = vrcp.pop %v1208
    %v1213 = vmul.f32 %v1205, %v1212
    %v1214 = vrcp.pop %v1209
    %v1215 = vmul.f32 %v1206, %v1214
    %v1216 = vmul.f32 %v1189, %v1211
    %v1217 = vmul.f32 %v1190, %v1213
    %v1218 = vmul.f32 %v1191, %v1215
    %v1219 = vld [vmem:[%s5] sm:$0xff]
    %v1220 = vld [vmem:[%s5 + $0x8] sm:$0xff]
    %v1221 = vld [vmem:[%s5 + $0x10] sm:$0xff]
    %v1222 = vld [vmem:[%s5 + $0x18] sm:$0xff]
    %v1223 = vld [vmem:[%s5 + $0x20] sm:$0xff]
    %v1224 = vld [vmem:[%s5 + $0x28] sm:$0xff]
    %v1225 = vld [vmem:[%s5 + $0x30] sm:$0xff]
    %v1226 = vld [vmem:[%s5 + $0x38] sm:$0xff]
    %v1227 = vld [vmem:[%s5 + $0x40] sm:$0xff]
    %v1228 = vld [vmem:[%s5 + $0x48] sm:$0xff]
    %v1229 = vld [vmem:[%s5 + $0x50] sm:$0xff]
    %v1230 = vld [vmem:[%s5 + $0x58] sm:$0xff]
    %v1231 = vld [vmem:[%s5 + $0x60] sm:$0xff]
    %v1232 = vld [vmem:[%s5 + $0x68] sm:$0xff]
    %v1233 = vld [vmem:[%s5 + $0x70] sm:$0xff]
    %v1234 = vld [vmem:[%s5 + $0x78] sm:$0xff]
    %v1235 = vld [vmem:[%s5 + $0x80] sm:$0xff]
    %v1236 = vld [vmem:[%s5 + $0x88] sm:$0xff]
    %v1237 = vld [vmem:[%s5 + $0x90] sm:$0xff]
    %v1238 = vld [vmem:[%s5 + $0x98] sm:$0xff]
    %v1239 = vld [vmem:[%s5 + $0xa0] sm:$0xff]
    %v1240 = vld [vmem:[%s5 + $0xa8] sm:$0xff]
    %v1241 = vld [vmem:[%s5 + $0xb0] sm:$0xff]
    %v1242 = vld [vmem:[%s5 + $0xb8] sm:$0xff]
    %v1243 = vld [vmem:[%s5 + $0xc0] sm:$0x7]
    %v1245 = vsel %vm966, %v1216, 0
    %v1248 = vsel %vm966, %v1218, 0
    %1250 = vmatprep.subr.mxu0 0.0
    %1251 = vmatpush1.msra.mxu0 0.0
    %1252 = vmatprep.subr.mxu0 0.0
    %1253 = vmatpush1.msra.mxu0 0.0
    %1254 = vmatprep.subr.mxu0 0.0
    %1255 = vmatpush1.msra.mxu0 0.0
    %1256 = vmatprep.subr.mxu0 0.0
    %1257 = vmatpush1.msra.mxu0 0.0
    %1258 = vmatprep.subr.mxu0 0.0
    %1259 = vmatpush1.msra.mxu0 0.0
    %1260 = vmatprep.subr.mxu0 0.0
    %1261 = vmatpush1.msra.mxu0 0.0
    %1262 = vmatprep.subr.mxu0 0.0
    %1263 = vmatpush1.msra.mxu0 0.0
    %1264 = vmatprep.subr.mxu0 0.0
    %1265 = vmatpush1.msra.mxu0 0.0
    %1266 = vmatprep.subr.mxu0 0.0
    %1267 = vmatpush1.msra.mxu0 %v1234
    %1268 = vmatprep.subr.mxu0 0.0
    %1269 = vmatpush1.msra.mxu0 %v1233
    %1270 = vmatprep.subr.mxu0 0.0
    %1271 = vmatpush1.msra.mxu0 %v1232
    %1272 = vmatprep.subr.mxu0 0.0
    %1273 = vmatpush1.msra.mxu0 %v1231
    %1274 = vmatprep.subr.mxu0 0.0
    %1275 = vmatpush1.msra.mxu0 %v1230
    %1276 = vmatprep.subr.mxu0 0.0
    %1277 = vmatpush1.msra.mxu0 %v1229
    %1278 = vmatprep.subr.mxu0 0.0
    %1279 = vmatpush1.msra.mxu0 %v1228
    %1280 = vmatprep.subr.mxu0 0.0
    %1281 = vmatpush1.msra.mxu0 %v1227
    %1282 = vmatprep.subr.mxu0 0.0
    %1283 = vmatpush2.msra.mxu0 0.0
    %1284 = vmatprep.subr.mxu0 0.0
    %1285 = vmatpush2.msra.mxu0 0.0
    %1286 = vmatprep.subr.mxu0 0.0
    %1287 = vmatpush2.msra.mxu0 0.0
    %1288 = vmatprep.subr.mxu0 0.0
    %1289 = vmatpush2.msra.mxu0 0.0
    %1290 = vmatprep.subr.mxu0 0.0
    %1291 = vmatpush2.msra.mxu0 0.0
    %1292 = vmatprep.subr.mxu0 0.0
    %1293 = vmatpush2.msra.mxu0 0.0
    %1294 = vmatprep.subr.mxu0 0.0
    %1295 = vmatpush2.msra.mxu0 0.0
    %1296 = vmatprep.subr.mxu0 0.0
    %1297 = vmatpush2.msra.mxu0 0.0
    %1298 = vmatprep.subr.mxu0 0.0
    %1299 = vmatpush2.msra.mxu0 0.0
    %1300 = vmatprep.subr.mxu0 0.0
    %1301 = vmatpush2.msra.mxu0 0.0
    %1302 = vmatprep.subr.mxu0 0.0
    %1303 = vmatpush2.msra.mxu0 0.0
    %1304 = vmatprep.subr.mxu0 0.0
    %1305 = vmatpush2.msra.mxu0 0.0
    %1306 = vmatprep.subr.mxu0 0.0
    %1307 = vmatpush2.msra.mxu0 0.0
    %1308 = vmatprep.subr.mxu0 0.0
    %1309 = vmatpush2.msra.mxu0 0.0
    %1310 = vmatprep.subr.mxu0 0.0
    %1311 = vmatpush2.msra.mxu0 0.0
    %1312 = vmatprep.subr.mxu0 0.0
    %1313 = vmatpush2.msra.mxu0 0.0
    %1314 = vmatprep.mubr.f32.mxu0 0.0
    %1315 = vmatmul.mubr.f32.gmra.mxu0 %v1245
    %v1316 = vpop.f32.mrf.mxu0
    %v1317 = vadd.f32 0.0, %v1316
    %v1318 = vpop.f32.mrf.mxu0
    %1319 = vmatprep.mubr.f32.mxu0 0.0
    %1320 = vmatmul.mubr.f32.gmra.mxu0 %v1248
    %v1321 = vpop.f32.mrf.mxu0
    %v1322 = vadd.f32 0.0, %v1321
    %v1323 = vpop.f32.mrf.mxu0
    %1324 = vdwg.mxu0
    %v1325 = vsel %vm966, 0.0, 0
    %v1328 = vsel %vm966, %v1217, 0
    %1330 = vmatprep.subr.mxu0 0.0
    %1331 = vmatpush1.msra.mxu0 0.0
    %1332 = vmatprep.subr.mxu0 0.0
    %1333 = vmatpush1.msra.mxu0 0.0
    %1334 = vmatprep.subr.mxu0 0.0
    %1335 = vmatpush1.msra.mxu0 0.0
    %1336 = vmatprep.subr.mxu0 0.0
    %1337 = vmatpush1.msra.mxu0 0.0
    %1338 = vmatprep.subr.mxu0 0.0
    %1339 = vmatpush1.msra.mxu0 0.0
    %1340 = vmatprep.subr.mxu0 0.0
    %1341 = vmatpush1.msra.mxu0 0.0
    %1342 = vmatprep.subr.mxu0 0.0
    %1343 = vmatpush1.msra.mxu0 0.0
    %1344 = vmatprep.subr.mxu0 0.0
    %1345 = vmatpush1.msra.mxu0 0.0
    %1346 = vmatprep.subr.mxu0 0.0
    %1347 = vmatpush1.msra.mxu0 %v1226
    %1348 = vmatprep.subr.mxu0 0.0
    %1349 = vmatpush1.msra.mxu0 %v1225
    %1350 = vmatprep.subr.mxu0 0.0
    %1351 = vmatpush1.msra.mxu0 %v1224
    %1352 = vmatprep.subr.mxu0 0.0
    %1353 = vmatpush1.msra.mxu0 %v1223
    %1354 = vmatprep.subr.mxu0 0.0
    %1355 = vmatpush1.msra.mxu0 %v1222
    %1356 = vmatprep.subr.mxu0 0.0
    %1357 = vmatpush1.msra.mxu0 %v1221
    %1358 = vmatprep.subr.mxu0 0.0
    %1359 = vmatpush1.msra.mxu0 %v1220
    %1360 = vmatprep.subr.mxu0 0.0
    %1361 = vmatpush1.msra.mxu0 %v1219
    %1362 = vmatprep.subr.mxu0 0.0
    %1363 = vmatpush2.msra.mxu0 0.0
    %1364 = vmatprep.subr.mxu0 0.0
    %1365 = vmatpush2.msra.mxu0 0.0
    %1366 = vmatprep.subr.mxu0 0.0
    %1367 = vmatpush2.msra.mxu0 0.0
    %1368 = vmatprep.subr.mxu0 0.0
    %1369 = vmatpush2.msra.mxu0 0.0
    %1370 = vmatprep.subr.mxu0 0.0
    %1371 = vmatpush2.msra.mxu0 0.0
    %1372 = vmatprep.subr.mxu0 0.0
    %1373 = vmatpush2.msra.mxu0 0.0
    %1374 = vmatprep.subr.mxu0 0.0
    %1375 = vmatpush2.msra.mxu0 0.0
    %1376 = vmatprep.subr.mxu0 0.0
    %1377 = vmatpush2.msra.mxu0 0.0
    %1378 = vmatprep.subr.mxu0 0.0
    %1379 = vmatpush2.msra.mxu0 0.0
    %1380 = vmatprep.subr.mxu0 0.0
    %1381 = vmatpush2.msra.mxu0 0.0
    %1382 = vmatprep.subr.mxu0 0.0
    %1383 = vmatpush2.msra.mxu0 0.0
    %1384 = vmatprep.subr.mxu0 0.0
    %1385 = vmatpush2.msra.mxu0 0.0
    %1386 = vmatprep.subr.mxu0 0.0
    %1387 = vmatpush2.msra.mxu0 0.0
    %1388 = vmatprep.subr.mxu0 0.0
    %1389 = vmatpush2.msra.mxu0 0.0
    %1390 = vmatprep.subr.mxu0 0.0
    %1391 = vmatpush2.msra.mxu0 0.0
    %1392 = vmatprep.subr.mxu0 0.0
    %1393 = vmatpush2.msra.mxu0 0.0
    %1394 = vmatprep.mubr.f32.mxu0 0.0
    %1395 = vmatmul.mubr.f32.gmra.mxu0 %v1325
    %v1396 = vpop.f32.mrf.mxu0
    %v1397 = vadd.f32 %v1317, %v1396
    %v1398 = vpop.f32.mrf.mxu0
    %1399 = vmatprep.mubr.f32.mxu0 0.0
    %1400 = vmatmul.mubr.f32.gmra.mxu0 %v1328
    %v1401 = vpop.f32.mrf.mxu0
    %v1402 = vadd.f32 %v1322, %v1401
    %v1403 = vpop.f32.mrf.mxu0
    %1404 = vdwg.mxu0
    %1405 = vmatprep.subr.mxu0 0.0
    %1406 = vmatpush1.msra.mxu0 0.0
    %1407 = vmatprep.subr.mxu0 0.0
    %1408 = vmatpush1.msra.mxu0 0.0
    %1409 = vmatprep.subr.mxu0 0.0
    %1410 = vmatpush1.msra.mxu0 0.0
    %1411 = vmatprep.subr.mxu0 0.0
    %1412 = vmatpush1.msra.mxu0 0.0
    %1413 = vmatprep.subr.mxu0 0.0
    %1414 = vmatpush1.msra.mxu0 0.0
    %1415 = vmatprep.subr.mxu0 0.0
    %1416 = vmatpush1.msra.mxu0 0.0
    %1417 = vmatprep.subr.mxu0 0.0
    %1418 = vmatpush1.msra.mxu0 0.0
    %1419 = vmatprep.subr.mxu0 0.0
    %1420 = vmatpush1.msra.mxu0 0.0
    %1421 = vmatprep.subr.mxu0 0.0
    %1422 = vmatpush1.msra.mxu0 %v1242
    %1423 = vmatprep.subr.mxu0 0.0
    %1424 = vmatpush1.msra.mxu0 %v1241
    %1425 = vmatprep.subr.mxu0 0.0
    %1426 = vmatpush1.msra.mxu0 %v1240
    %1427 = vmatprep.subr.mxu0 0.0
    %1428 = vmatpush1.msra.mxu0 %v1239
    %1429 = vmatprep.subr.mxu0 0.0
    %1430 = vmatpush1.msra.mxu0 %v1238
    %1431 = vmatprep.subr.mxu0 0.0
    %1432 = vmatpush1.msra.mxu0 %v1237
    %1433 = vmatprep.subr.mxu0 0.0
    %1434 = vmatpush1.msra.mxu0 %v1236
    %1435 = vmatprep.subr.mxu0 0.0
    %1436 = vmatpush1.msra.mxu0 %v1235
    %1437 = vmatprep.subr.mxu0 0.0
    %1438 = vmatpush2.msra.mxu0 0.0
    %1439 = vmatprep.subr.mxu0 0.0
    %1440 = vmatpush2.msra.mxu0 0.0
    %1441 = vmatprep.subr.mxu0 0.0
    %1442 = vmatpush2.msra.mxu0 0.0
    %1443 = vmatprep.subr.mxu0 0.0
    %1444 = vmatpush2.msra.mxu0 0.0
    %1445 = vmatprep.subr.mxu0 0.0
    %1446 = vmatpush2.msra.mxu0 0.0
    %1447 = vmatprep.subr.mxu0 0.0
    %1448 = vmatpush2.msra.mxu0 0.0
    %1449 = vmatprep.subr.mxu0 0.0
    %1450 = vmatpush2.msra.mxu0 0.0
    %1451 = vmatprep.subr.mxu0 0.0
    %1452 = vmatpush2.msra.mxu0 0.0
    %1453 = vmatprep.subr.mxu0 0.0
    %1454 = vmatpush2.msra.mxu0 0.0
    %1455 = vmatprep.subr.mxu0 0.0
    %1456 = vmatpush2.msra.mxu0 0.0
    %1457 = vmatprep.subr.mxu0 0.0
    %1458 = vmatpush2.msra.mxu0 0.0
    %1459 = vmatprep.subr.mxu0 0.0
    %1460 = vmatpush2.msra.mxu0 0.0
    %1461 = vmatprep.subr.mxu0 0.0
    %1462 = vmatpush2.msra.mxu0 0.0
    %1463 = vmatprep.subr.mxu0 0.0
    %1464 = vmatpush2.msra.mxu0 0.0
    %1465 = vmatprep.subr.mxu0 0.0
    %1466 = vmatpush2.msra.mxu0 0.0
    %1467 = vmatprep.subr.mxu0 0.0
    %1468 = vmatpush2.msra.mxu0 0.0
    %1469 = vmatprep.mubr.f32.mxu0 0.0
    %1470 = vmatmul.mubr.f32.gmra.mxu0 %v1328
    %v1471 = vpop.f32.mrf.mxu0
    %v1472 = vadd.f32 0.0, %v1471
    %v1473 = vpop.f32.mrf.mxu0
    %1474 = vmatprep.mubr.f32.mxu0 0.0
    %1475 = vmatmul.mubr.f32.gmra.mxu0 %v1325
    %v1476 = vpop.f32.mrf.mxu0
    %v1477 = vadd.f32 0.0, %v1476
    %v1478 = vpop.f32.mrf.mxu0
    %1479 = vdwg.mxu0
    %v1480 = vadd.f32 %v1397, %v1472
    %v1481 = vadd.f32 %v1402, %v1477
    %v1482 = vlaneseq
    %v1483 = vshrl.u32 %v1482, 7
    %v1484 = vsub.s32 0, %v1483
    %v1485 = vrot.slane %v1243, %v1484
    %v1486 = vadd.f32 %v1480, %v1485
    %v1487 = vadd.f32 %v1481, %v1485
    %1488 = vmatprep.subr.mxu0 0.0
    %1489 = vmatpush1.msra.mxu0 1.0
    %1490 = vmatprep.subr.mxu0 0.0
    %1491 = vmatpush1.msra.mxu0 1.0
    %1492 = vmatprep.subr.mxu0 0.0
    %1493 = vmatpush1.msra.mxu0 1.0
    %1494 = vmatprep.subr.mxu0 0.0
    %1495 = vmatpush1.msra.mxu0 1.0
    %1496 = vmatprep.subr.mxu0 0.0
    %1497 = vmatpush1.msra.mxu0 1.0
    %1498 = vmatprep.subr.mxu0 0.0
    %1499 = vmatpush1.msra.mxu0 1.0
    %1500 = vmatprep.subr.mxu0 0.0
    %1501 = vmatpush1.msra.mxu0 1.0
    %1502 = vmatprep.subr.mxu0 0.0
    %1503 = vmatpush1.msra.mxu0 1.0
    %1504 = vmatprep.subr.mxu0 0.0
    %1505 = vmatpush1.msra.mxu0 1.0
    %1506 = vmatprep.subr.mxu0 0.0
    %1507 = vmatpush1.msra.mxu0 1.0
    %1508 = vmatprep.subr.mxu0 0.0
    %1509 = vmatpush1.msra.mxu0 1.0
    %1510 = vmatprep.subr.mxu0 0.0
    %1511 = vmatpush1.msra.mxu0 1.0
    %1512 = vmatprep.subr.mxu0 0.0
    %1513 = vmatpush1.msra.mxu0 1.0
    %1514 = vmatprep.subr.mxu0 0.0
    %1515 = vmatpush1.msra.mxu0 1.0
    %1516 = vmatprep.subr.mxu0 0.0
    %1517 = vmatpush1.msra.mxu0 1.0
    %1518 = vmatprep.subr.mxu0 0.0
    %1519 = vmatpush1.msra.mxu0 1.0
    %1520 = vmatprep.subr.mxu0 0.0
    %1521 = vmatpush2.msra.mxu0 0.0
    %1522 = vmatprep.subr.mxu0 0.0
    %1523 = vmatpush2.msra.mxu0 0.0
    %1524 = vmatprep.subr.mxu0 0.0
    %1525 = vmatpush2.msra.mxu0 0.0
    %1526 = vmatprep.subr.mxu0 0.0
    %1527 = vmatpush2.msra.mxu0 0.0
    %1528 = vmatprep.subr.mxu0 0.0
    %1529 = vmatpush2.msra.mxu0 0.0
    %1530 = vmatprep.subr.mxu0 0.0
    %1531 = vmatpush2.msra.mxu0 0.0
    %1532 = vmatprep.subr.mxu0 0.0
    %1533 = vmatpush2.msra.mxu0 0.0
    %1534 = vmatprep.subr.mxu0 0.0
    %1535 = vmatpush2.msra.mxu0 0.0
    %1536 = vmatprep.subr.mxu0 0.0
    %1537 = vmatpush2.msra.mxu0 0.0
    %1538 = vmatprep.subr.mxu0 0.0
    %1539 = vmatpush2.msra.mxu0 0.0
    %1540 = vmatprep.subr.mxu0 0.0
    %1541 = vmatpush2.msra.mxu0 0.0
    %1542 = vmatprep.subr.mxu0 0.0
    %1543 = vmatpush2.msra.mxu0 0.0
    %1544 = vmatprep.subr.mxu0 0.0
    %1545 = vmatpush2.msra.mxu0 0.0
    %1546 = vmatprep.subr.mxu0 0.0
    %1547 = vmatpush2.msra.mxu0 0.0
    %1548 = vmatprep.subr.mxu0 0.0
    %1549 = vmatpush2.msra.mxu0 0.0
    %1550 = vmatprep.subr.mxu0 0.0
    %1551 = vmatpush2.msra.mxu0 0.0
    %1552 = vmatprep.mubr.f32.mxu0 0.0
    %1553 = vmatmul.mubr.f32.gmra.mxu0 %v1486
    %v1554 = vpop.f32.mrf.mxu0
    %v1555 = vadd.f32 0.0, %v1554
    %v1556 = vpop.f32.mrf.mxu0
    %1557 = vmatprep.mubr.f32.mxu0 0.0
    %1558 = vmatmul.mubr.f32.gmra.mxu0 %v1487
    %v1559 = vpop.f32.mrf.mxu0
    %v1560 = vadd.f32 0.0, %v1559
    %v1561 = vpop.f32.mrf.mxu0
    %1562 = vdwg.mxu0
    %v1563 = vsel %vm469, %v1555, 0.0
    %v1564 = vsel %vm469, %v1560, 0.0
    %v1565 = vadd.f32 %v1563, %v1564
    %v1566 = vmul.f32 %v1565, 0.00390625
    %1568 = vset.pattern.permute.xlu0 0
    %1569 = vperm.xlu0 %1568, %v1566
    %v1570 = vpop.permute.xlu0 %1569
    %v1572 = vsub.f32 %v1486, %v1570
    %v1573 = vsub.f32 %v1487, %v1570
    %v1574 = vmul.f32 %v1572, %v1572
    %v1575 = vmul.f32 %v1573, %v1573
    %1576 = vmatprep.subr.mxu0 0.0
    %1577 = vmatpush1.msra.mxu0 1.0
    %1578 = vmatprep.subr.mxu0 0.0
    %1579 = vmatpush1.msra.mxu0 1.0
    %1580 = vmatprep.subr.mxu0 0.0
    %1581 = vmatpush1.msra.mxu0 1.0
    %1582 = vmatprep.subr.mxu0 0.0
    %1583 = vmatpush1.msra.mxu0 1.0
    %1584 = vmatprep.subr.mxu0 0.0
    %1585 = vmatpush1.msra.mxu0 1.0
    %1586 = vmatprep.subr.mxu0 0.0
    %1587 = vmatpush1.msra.mxu0 1.0
    %1588 = vmatprep.subr.mxu0 0.0
    %1589 = vmatpush1.msra.mxu0 1.0
    %1590 = vmatprep.subr.mxu0 0.0
    %1591 = vmatpush1.msra.mxu0 1.0
    %1592 = vmatprep.subr.mxu0 0.0
    %1593 = vmatpush1.msra.mxu0 1.0
    %1594 = vmatprep.subr.mxu0 0.0
    %1595 = vmatpush1.msra.mxu0 1.0
    %1596 = vmatprep.subr.mxu0 0.0
    %1597 = vmatpush1.msra.mxu0 1.0
    %1598 = vmatprep.subr.mxu0 0.0
    %1599 = vmatpush1.msra.mxu0 1.0
    %1600 = vmatprep.subr.mxu0 0.0
    %1601 = vmatpush1.msra.mxu0 1.0
    %1602 = vmatprep.subr.mxu0 0.0
    %1603 = vmatpush1.msra.mxu0 1.0
    %1604 = vmatprep.subr.mxu0 0.0
    %1605 = vmatpush1.msra.mxu0 1.0
    %1606 = vmatprep.subr.mxu0 0.0
    %1607 = vmatpush1.msra.mxu0 1.0
    %1608 = vmatprep.subr.mxu0 0.0
    %1609 = vmatpush2.msra.mxu0 0.0
    %1610 = vmatprep.subr.mxu0 0.0
    %1611 = vmatpush2.msra.mxu0 0.0
    %1612 = vmatprep.subr.mxu0 0.0
    %1613 = vmatpush2.msra.mxu0 0.0
    %1614 = vmatprep.subr.mxu0 0.0
    %1615 = vmatpush2.msra.mxu0 0.0
    %1616 = vmatprep.subr.mxu0 0.0
    %1617 = vmatpush2.msra.mxu0 0.0
    %1618 = vmatprep.subr.mxu0 0.0
    %1619 = vmatpush2.msra.mxu0 0.0
    %1620 = vmatprep.subr.mxu0 0.0
    %1621 = vmatpush2.msra.mxu0 0.0
    %1622 = vmatprep.subr.mxu0 0.0
    %1623 = vmatpush2.msra.mxu0 0.0
    %1624 = vmatprep.subr.mxu0 0.0
    %1625 = vmatpush2.msra.mxu0 0.0
    %1626 = vmatprep.subr.mxu0 0.0
    %1627 = vmatpush2.msra.mxu0 0.0
    %1628 = vmatprep.subr.mxu0 0.0
    %1629 = vmatpush2.msra.mxu0 0.0
    %1630 = vmatprep.subr.mxu0 0.0
    %1631 = vmatpush2.msra.mxu0 0.0
    %1632 = vmatprep.subr.mxu0 0.0
    %1633 = vmatpush2.msra.mxu0 0.0
    %1634 = vmatprep.subr.mxu0 0.0
    %1635 = vmatpush2.msra.mxu0 0.0
    %1636 = vmatprep.subr.mxu0 0.0
    %1637 = vmatpush2.msra.mxu0 0.0
    %1638 = vmatprep.subr.mxu0 0.0
    %1639 = vmatpush2.msra.mxu0 0.0
    %1640 = vmatprep.mubr.f32.mxu0 0.0
    %1641 = vmatmul.mubr.f32.gmra.mxu0 %v1574
    %v1642 = vpop.f32.mrf.mxu0
    %v1643 = vadd.f32 0.0, %v1642
    %v1644 = vpop.f32.mrf.mxu0
    %1645 = vmatprep.mubr.f32.mxu0 0.0
    %1646 = vmatmul.mubr.f32.gmra.mxu0 %v1575
    %v1647 = vpop.f32.mrf.mxu0
    %v1648 = vadd.f32 0.0, %v1647
    %v1649 = vpop.f32.mrf.mxu0
    %1650 = vdwg.mxu0
    %v1651 = vsel %vm469, %v1643, 0.0
    %v1652 = vsel %vm469, %v1648, 0.0
    %v1653 = vadd.f32 %v1651, %v1652
    %v1654 = vmul.f32 %v1653, 0.00390625
    %v1655 = vadd.f32 %v1654, 1e-05
    %v1656 = vrsqrt.pop %v1655
    %1658 = vset.pattern.permute.xlu0 0
    %1659 = vperm.xlu0 %1658, %v1656
    %v1660 = vpop.permute.xlu0 %1659
    %v1662 = vmul.f32 %v1572, %v1660
    %v1663 = vmul.f32 %v1573, %v1660
    %v1664 = vlaneseq
    %v1665 = vshrl.u32 %v1664, 7
    %v1666 = vsub.s32 1, %v1665
    %v1667 = vrot.slane %v1243, %v1666
    %v1668 = vmul.f32 %v1662, %v1667
    %v1669 = vmul.f32 %v1663, %v1667
    %v1670 = vlaneseq
    %v1671 = vshrl.u32 %v1670, 7
    %v1672 = vsub.s32 2, %v1671
    %v1673 = vrot.slane %v1243, %v1672
    %v1674 = vadd.f32 %v1668, %v1673
    %v1675 = vadd.f32 %v1669, %v1673
    %v1676 = vmin.f32 %v1674, 20.0
    %v1677 = vmin.f32 %v1675, 20.0
    %v1678 = vmul.f32 %v1676, 1.442695
    %v1679 = vpow.pop %v1678
    %v1680 = vmul.f32 %v1677, 1.442695
    %v1681 = vpow.pop %v1680
    %v1682 = vadd.f32 %v1679, 2.0
    %v1683 = vadd.f32 %v1681, 2.0
    %v1684 = vmul.f32 %v1679, %v1682
    %v1685 = vmul.f32 %v1681, %v1683
    %v1686 = vadd.f32 %v1684, 2.0
    %v1687 = vadd.f32 %v1685, 2.0
    %v1688 = vrcp.pop %v1686
    %v1689 = vmul.f32 %v1684, %v1688
    %v1690 = vrcp.pop %v1687
    %v1691 = vmul.f32 %v1685, %v1690
    %v1692 = vmul.f32 %v1674, %v1689
    %v1693 = vmul.f32 %v1675, %v1691
    %v1694 = vld [vmem:[%s6] sm:$0xff]
    %v1695 = vld [vmem:[%s6 + $0x8] sm:$0xff]
    %v1696 = vld [vmem:[%s6 + $0x10] sm:$0xff]
    %v1697 = vld [vmem:[%s6 + $0x18] sm:$0xff]
    %v1698 = vld [vmem:[%s6 + $0x20] sm:$0xff]
    %v1699 = vld [vmem:[%s6 + $0x28] sm:$0xff]
    %v1700 = vld [vmem:[%s6 + $0x30] sm:$0xff]
    %v1701 = vld [vmem:[%s6 + $0x38] sm:$0xff]
    %v1702 = vld [vmem:[%s6 + $0x40] sm:$0xff]
    %v1703 = vld [vmem:[%s6 + $0x48] sm:$0xff]
    %v1704 = vld [vmem:[%s6 + $0x50] sm:$0xff]
    %v1705 = vld [vmem:[%s6 + $0x58] sm:$0xff]
    %v1706 = vld [vmem:[%s6 + $0x60] sm:$0xff]
    %v1707 = vld [vmem:[%s6 + $0x68] sm:$0xff]
    %v1708 = vld [vmem:[%s6 + $0x70] sm:$0xff]
    %v1709 = vld [vmem:[%s6 + $0x78] sm:$0xff]
    %v1710 = vld [vmem:[%s6 + $0x80] sm:$0xff]
    %v1711 = vld [vmem:[%s6 + $0x88] sm:$0xff]
    %v1712 = vld [vmem:[%s6 + $0x90] sm:$0xff]
    %v1713 = vld [vmem:[%s6 + $0x98] sm:$0xff]
    %v1714 = vld [vmem:[%s6 + $0xa0] sm:$0xff]
    %v1715 = vld [vmem:[%s6 + $0xa8] sm:$0xff]
    %v1716 = vld [vmem:[%s6 + $0xb0] sm:$0xff]
    %v1717 = vld [vmem:[%s6 + $0xb8] sm:$0xff]
    %v1718 = vld [vmem:[%s6 + $0xc0] sm:$0xff]
    %v1719 = vld [vmem:[%s6 + $0xc8] sm:$0xff]
    %v1720 = vld [vmem:[%s6 + $0xd0] sm:$0xff]
    %v1721 = vld [vmem:[%s6 + $0xd8] sm:$0xff]
    %v1722 = vld [vmem:[%s6 + $0xe0] sm:$0xff]
    %v1723 = vld [vmem:[%s6 + $0xe8] sm:$0xff]
    %v1724 = vld [vmem:[%s6 + $0xf0] sm:$0xff]
    %v1725 = vld [vmem:[%s6 + $0xf8] sm:$0xff]
    %v1726 = vld [vmem:[%s6 + $0x100] sm:$0xff]
    %v1727 = vld [vmem:[%s6 + $0x108] sm:$0xff]
    %v1728 = vld [vmem:[%s6 + $0x110] sm:$0xff]
    %v1729 = vld [vmem:[%s6 + $0x118] sm:$0xff]
    %v1730 = vld [vmem:[%s6 + $0x120] sm:$0xff]
    %v1731 = vld [vmem:[%s6 + $0x128] sm:$0xf]
    %v1732 = vld [vmem:[%s1] sm:$0xff]
    %v1733 = vlaneseq
    %v1734 = vshrl.u32 %v1733, 7
    %v1735 = vsub.s32 0, %v1734
    %v1736 = vrot.slane %v1694, %v1735
    %vm1737 = vcmask 293888
    %v1739 = vsel %vm1737, %v1732, 0
    %vm1741 = vcmask 1043456
    %v1743 = vsel %vm1741, %v1731, 0
    %1745 = vmatprep.subr.mxu0 0.0
    %1746 = vmatpush1.msra.mxu0 0.0
    %1747 = vmatprep.subr.mxu0 0.0
    %1748 = vmatpush1.msra.mxu0 0.0
    %1749 = vmatprep.subr.mxu0 0.0
    %1750 = vmatpush1.msra.mxu0 0.0
    %1751 = vmatprep.subr.mxu0 0.0
    %1752 = vmatpush1.msra.mxu0 0.0
    %1753 = vmatprep.subr.mxu0 0.0
    %1754 = vmatpush1.msra.mxu0 0.0
    %1755 = vmatprep.subr.mxu0 0.0
    %1756 = vmatpush1.msra.mxu0 0.0
    %1757 = vmatprep.subr.mxu0 0.0
    %1758 = vmatpush1.msra.mxu0 0.0
    %1759 = vmatprep.subr.mxu0 0.0
    %1760 = vmatpush1.msra.mxu0 0.0
    %1761 = vmatprep.subr.mxu0 0.0
    %1762 = vmatpush1.msra.mxu0 0.0
    %1763 = vmatprep.subr.mxu0 0.0
    %1764 = vmatpush1.msra.mxu0 0.0
    %1765 = vmatprep.subr.mxu0 0.0
    %1766 = vmatpush1.msra.mxu0 0.0
    %1767 = vmatprep.subr.mxu0 0.0
    %1768 = vmatpush1.msra.mxu0 %v1743
    %1769 = vmatprep.subr.mxu0 0.0
    %1770 = vmatpush1.msra.mxu0 %v1730
    %1771 = vmatprep.subr.mxu0 0.0
    %1772 = vmatpush1.msra.mxu0 %v1729
    %1773 = vmatprep.subr.mxu0 0.0
    %1774 = vmatpush1.msra.mxu0 %v1728
    %1775 = vmatprep.subr.mxu0 0.0
    %1776 = vmatpush1.msra.mxu0 %v1727
    %1777 = vmatprep.subr.mxu0 0.0
    %1778 = vmatpush2.msra.mxu0 0.0
    %1779 = vmatprep.subr.mxu0 0.0
    %1780 = vmatpush2.msra.mxu0 0.0
    %1781 = vmatprep.subr.mxu0 0.0
    %1782 = vmatpush2.msra.mxu0 0.0
    %1783 = vmatprep.subr.mxu0 0.0
    %1784 = vmatpush2.msra.mxu0 0.0
    %1785 = vmatprep.subr.mxu0 0.0
    %1786 = vmatpush2.msra.mxu0 0.0
    %1787 = vmatprep.subr.mxu0 0.0
    %1788 = vmatpush2.msra.mxu0 0.0
    %1789 = vmatprep.subr.mxu0 0.0
    %1790 = vmatpush2.msra.mxu0 0.0
    %1791 = vmatprep.subr.mxu0 0.0
    %1792 = vmatpush2.msra.mxu0 0.0
    %1793 = vmatprep.subr.mxu0 0.0
    %1794 = vmatpush2.msra.mxu0 0.0
    %1795 = vmatprep.subr.mxu0 0.0
    %1796 = vmatpush2.msra.mxu0 0.0
    %1797 = vmatprep.subr.mxu0 0.0
    %1798 = vmatpush2.msra.mxu0 0.0
    %1799 = vmatprep.subr.mxu0 0.0
    %1800 = vmatpush2.msra.mxu0 0.0
    %1801 = vmatprep.subr.mxu0 0.0
    %1802 = vmatpush2.msra.mxu0 0.0
    %1803 = vmatprep.subr.mxu0 0.0
    %1804 = vmatpush2.msra.mxu0 0.0
    %1805 = vmatprep.subr.mxu0 0.0
    %1806 = vmatpush2.msra.mxu0 0.0
    %1807 = vmatprep.subr.mxu0 0.0
    %1808 = vmatpush2.msra.mxu0 0.0
    %1809 = vmatprep.mubr.f32.mxu0 0.0
    %1810 = vmatmul.mubr.f32.gmra.mxu0 %v1739
    %v1811 = vpop.f32.mrf.mxu0
    %v1812 = vadd.f32 %v1736, %v1811
    %v1813 = vpop.f32.mrf.mxu0
    %1814 = vdwg.mxu0
    %1815 = vmatprep.subr.mxu0 0.0
    %1816 = vmatpush1.msra.mxu0 %v1710
    %1817 = vmatprep.subr.mxu0 0.0
    %1818 = vmatpush1.msra.mxu0 %v1709
    %1819 = vmatprep.subr.mxu0 0.0
    %1820 = vmatpush1.msra.mxu0 %v1708
    %1821 = vmatprep.subr.mxu0 0.0
    %1822 = vmatpush1.msra.mxu0 %v1707
    %1823 = vmatprep.subr.mxu0 0.0
    %1824 = vmatpush1.msra.mxu0 %v1706
    %1825 = vmatprep.subr.mxu0 0.0
    %1826 = vmatpush1.msra.mxu0 %v1705
    %1827 = vmatprep.subr.mxu0 0.0
    %1828 = vmatpush1.msra.mxu0 %v1704
    %1829 = vmatprep.subr.mxu0 0.0
    %1830 = vmatpush1.msra.mxu0 %v1703
    %1831 = vmatprep.subr.mxu0 0.0
    %1832 = vmatpush1.msra.mxu0 %v1702
    %1833 = vmatprep.subr.mxu0 0.0
    %1834 = vmatpush1.msra.mxu0 %v1701
    %1835 = vmatprep.subr.mxu0 0.0
    %1836 = vmatpush1.msra.mxu0 %v1700
    %1837 = vmatprep.subr.mxu0 0.0
    %1838 = vmatpush1.msra.mxu0 %v1699
    %1839 = vmatprep.subr.mxu0 0.0
    %1840 = vmatpush1.msra.mxu0 %v1698
    %1841 = vmatprep.subr.mxu0 0.0
    %1842 = vmatpush1.msra.mxu0 %v1697
    %1843 = vmatprep.subr.mxu0 0.0
    %1844 = vmatpush1.msra.mxu0 %v1696
    %1845 = vmatprep.subr.mxu0 0.0
    %1846 = vmatpush1.msra.mxu0 %v1695
    %1847 = vmatprep.subr.mxu0 0.0
    %1848 = vmatpush2.msra.mxu0 0.0
    %1849 = vmatprep.subr.mxu0 0.0
    %1850 = vmatpush2.msra.mxu0 0.0
    %1851 = vmatprep.subr.mxu0 0.0
    %1852 = vmatpush2.msra.mxu0 0.0
    %1853 = vmatprep.subr.mxu0 0.0
    %1854 = vmatpush2.msra.mxu0 0.0
    %1855 = vmatprep.subr.mxu0 0.0
    %1856 = vmatpush2.msra.mxu0 0.0
    %1857 = vmatprep.subr.mxu0 0.0
    %1858 = vmatpush2.msra.mxu0 0.0
    %1859 = vmatprep.subr.mxu0 0.0
    %1860 = vmatpush2.msra.mxu0 0.0
    %1861 = vmatprep.subr.mxu0 0.0
    %1862 = vmatpush2.msra.mxu0 0.0
    %1863 = vmatprep.subr.mxu0 0.0
    %1864 = vmatpush2.msra.mxu0 0.0
    %1865 = vmatprep.subr.mxu0 0.0
    %1866 = vmatpush2.msra.mxu0 0.0
    %1867 = vmatprep.subr.mxu0 0.0
    %1868 = vmatpush2.msra.mxu0 0.0
    %1869 = vmatprep.subr.mxu0 0.0
    %1870 = vmatpush2.msra.mxu0 0.0
    %1871 = vmatprep.subr.mxu0 0.0
    %1872 = vmatpush2.msra.mxu0 0.0
    %1873 = vmatprep.subr.mxu0 0.0
    %1874 = vmatpush2.msra.mxu0 0.0
    %1875 = vmatprep.subr.mxu0 0.0
    %1876 = vmatpush2.msra.mxu0 0.0
    %1877 = vmatprep.subr.mxu0 0.0
    %1878 = vmatpush2.msra.mxu0 0.0
    %1879 = vmatprep.mubr.f32.mxu0 0.0
    %1880 = vmatmul.mubr.f32.gmra.mxu0 %v1692
    %v1881 = vpop.f32.mrf.mxu0
    %v1882 = vadd.f32 0.0, %v1881
    %v1883 = vpop.f32.mrf.mxu0
    %1884 = vdwg.mxu0
    %v1885 = vadd.f32 %v1812, %v1882
    %1886 = vmatprep.subr.mxu0 0.0
    %1887 = vmatpush1.msra.mxu0 %v1726
    %1888 = vmatprep.subr.mxu0 0.0
    %1889 = vmatpush1.msra.mxu0 %v1725
    %1890 = vmatprep.subr.mxu0 0.0
    %1891 = vmatpush1.msra.mxu0 %v1724
    %1892 = vmatprep.subr.mxu0 0.0
    %1893 = vmatpush1.msra.mxu0 %v1723
    %1894 = vmatprep.subr.mxu0 0.0
    %1895 = vmatpush1.msra.mxu0 %v1722
    %1896 = vmatprep.subr.mxu0 0.0
    %1897 = vmatpush1.msra.mxu0 %v1721
    %1898 = vmatprep.subr.mxu0 0.0
    %1899 = vmatpush1.msra.mxu0 %v1720
    %1900 = vmatprep.subr.mxu0 0.0
    %1901 = vmatpush1.msra.mxu0 %v1719
    %1902 = vmatprep.subr.mxu0 0.0
    %1903 = vmatpush1.msra.mxu0 %v1718
    %1904 = vmatprep.subr.mxu0 0.0
    %1905 = vmatpush1.msra.mxu0 %v1717
    %1906 = vmatprep.subr.mxu0 0.0
    %1907 = vmatpush1.msra.mxu0 %v1716
    %1908 = vmatprep.subr.mxu0 0.0
    %1909 = vmatpush1.msra.mxu0 %v1715
    %1910 = vmatprep.subr.mxu0 0.0
    %1911 = vmatpush1.msra.mxu0 %v1714
    %1912 = vmatprep.subr.mxu0 0.0
    %1913 = vmatpush1.msra.mxu0 %v1713
    %1914 = vmatprep.subr.mxu0 0.0
    %1915 = vmatpush1.msra.mxu0 %v1712
    %1916 = vmatprep.subr.mxu0 0.0
    %1917 = vmatpush1.msra.mxu0 %v1711
    %1918 = vmatprep.subr.mxu0 0.0
    %1919 = vmatpush2.msra.mxu0 0.0
    %1920 = vmatprep.subr.mxu0 0.0
    %1921 = vmatpush2.msra.mxu0 0.0
    %1922 = vmatprep.subr.mxu0 0.0
    %1923 = vmatpush2.msra.mxu0 0.0
    %1924 = vmatprep.subr.mxu0 0.0
    %1925 = vmatpush2.msra.mxu0 0.0
    %1926 = vmatprep.subr.mxu0 0.0
    %1927 = vmatpush2.msra.mxu0 0.0
    %1928 = vmatprep.subr.mxu0 0.0
    %1929 = vmatpush2.msra.mxu0 0.0
    %1930 = vmatprep.subr.mxu0 0.0
    %1931 = vmatpush2.msra.mxu0 0.0
    %1932 = vmatprep.subr.mxu0 0.0
    %1933 = vmatpush2.msra.mxu0 0.0
    %1934 = vmatprep.subr.mxu0 0.0
    %1935 = vmatpush2.msra.mxu0 0.0
    %1936 = vmatprep.subr.mxu0 0.0
    %1937 = vmatpush2.msra.mxu0 0.0
    %1938 = vmatprep.subr.mxu0 0.0
    %1939 = vmatpush2.msra.mxu0 0.0
    %1940 = vmatprep.subr.mxu0 0.0
    %1941 = vmatpush2.msra.mxu0 0.0
    %1942 = vmatprep.subr.mxu0 0.0
    %1943 = vmatpush2.msra.mxu0 0.0
    %1944 = vmatprep.subr.mxu0 0.0
    %1945 = vmatpush2.msra.mxu0 0.0
    %1946 = vmatprep.subr.mxu0 0.0
    %1947 = vmatpush2.msra.mxu0 0.0
    %1948 = vmatprep.subr.mxu0 0.0
    %1949 = vmatpush2.msra.mxu0 0.0
    %1950 = vmatprep.mubr.f32.mxu0 0.0
    %1951 = vmatmul.mubr.f32.gmra.mxu0 %v1693
    %v1952 = vpop.f32.mrf.mxu0
    %v1953 = vadd.f32 0.0, %v1952
    %v1954 = vpop.f32.mrf.mxu0
    %1955 = vdwg.mxu0
    %v1956 = vadd.f32 %v1885, %v1953
    %v1957 = vmul.f32 %v1956, 1.442695
    %v1958 = vpow.pop %v1957
    %v1959 = vld [vmem:[%s2] sm:$0xff]
    %1961 = vrot.lane.b32.xlu0 %v1959, 16
    %v1962 = vpop.permute.xlu0 %1961
    %v1964 = vmul.f32 %v1958, %v1962
    %1966 = vrot.lane.b32.xlu0 %v1964, 112
    %v1967 = vpop.permute.xlu0 %1966
    %v1969 = vadd.f32 %v1956, %v1967
    %v1970 = vmul.f32 %v1958, %v1958
    %v1971 = vmul.f32 %v1956, %v1956
    %1973 = vrot.lane.b32.xlu0 %v1971, 16
    %v1974 = vpop.permute.xlu0 %1973
    %v1976 = vadd.f32 %v1970, %v1974
    %v1977 = vsub.f32 %v1976, %v1956
    %v1978 = vsub.f32 %v1977, 0.5
    %v1979 = vmul.f32 %v1978, 1e-05
    %v1980 = vsel %vm45, %v1969, %v1979
    %1981 = vst.msk [vmem:[#allocation2] sm:$0xff] %vm363, %v1980
    // Predicated region
    $region30: #{tpu_custom_call.1} parent=1 // pred_check
      _
    $region31: #{tpu_custom_call.1} parent=1 // pred_check_branch
      %1983 = sbr.rel (0) target = $region33
    $region32: #{tpu_custom_call.1} parent=1 // pred_region
      %s1985 = ssub.s32 128, 128
      %1986 = vsyncadd [#allocation3], %s1985
      %s1988 = sshll.u32 [#allocation2], 4
      %s1989 = int_to_ptr.vmem [resolvable:$true] %s1988
      %1991 = dma.vmem_to_hbm [thread:$0]  %s1989, 128, %s7, [#allocation3]
    $region33: #{tpu_custom_call.1} parent=1 // pred_fallthru
      _
    // Predicated region
    $region34: #{tpu_custom_call.1} parent=1 // pred_check
      _
    $region35: #{tpu_custom_call.1} parent=1 // pred_check_branch
      %1993 = sbr.rel (0) target = $region37
    $region36: #{tpu_custom_call.1} parent=1 // pred_region
      %1994 = dma.done [#allocation3], 128
    $region37: #{tpu_custom_call.1} parent=1 // pred_fallthru
      _
    %1995 = vsyncpa [#allocation3], 1

</llo_original>
